<compile_context>
chip_gen: v5e
topology: v5e:2x2
jax: 0.10.0
libtpu: 0.0.40
codegen_flags: <defaults>
</compile_context>

<pallas_src>
import jax
import jax.numpy as jnp
from jax.experimental import pallas as pl
from jax.experimental.pallas import tpu as pltpu

EPS = 1e-12


def _tower_block(h, w, b, gamma, beta):
    """LayerNorm( relu(h @ w + b) + h ).  h/b/gamma/beta f32; w bf16 (MXU input)."""
    y = jnp.dot(h.astype(jnp.bfloat16), w, preferred_element_type=jnp.float32) + b
    y = jnp.maximum(y, 0.0) + h              # ReLU; dropout(p=0)=identity; residual
    # One-pass LN stats: the two cross-lane reductions are independent -> they pipeline
    # through the XLU instead of serializing (two-pass form puts a VPU sub/square between
    # them on the critical path).  Clamp guards the E[y^2]-mean^2 cancellation case.
    mean = jnp.mean(y, axis=-1, keepdims=True)
    mean_sq = jnp.mean(y * y, axis=-1, keepdims=True)
    var = jnp.maximum(mean_sq - mean * mean, 0.0)
    # rsqrt runs on the EUP slot (otherwise idle), keeping VALU free for sub/mul/add
    return (y - mean) * jax.lax.rsqrt(var + EPS) * gamma + beta


def tower_kernel(x_ref, wi_ref, w1_ref, w2_ref, wo_ref, vec_ref, bo_ref, o_ref):
    # vec_ref: (8, h) f32 = [bi, b1, g1, be1, b2, g2, be2, <zeros>]
    vecs = vec_ref[...]
    bi = vecs[0:1, :]
    b1, g1, be1 = vecs[1:2, :], vecs[2:3, :], vecs[3:4, :]
    b2, g2, be2 = vecs[4:5, :], vecs[5:6, :], vecs[6:7, :]

    # input projector: bf16 MXU inputs, f32 accumulation (single cast, no extra f32 copy)
    h = jnp.dot(x_ref[...].astype(jnp.bfloat16), wi_ref[...],
                preferred_element_type=jnp.float32) + bi

    # tower blocks (elementwise math in f32)
    h = _tower_block(h, w1_ref[...], b1, g1, be1)
    h = _tower_block(h, w2_ref[...], b2, g2, be2)

    # output projector; store the real (tile_b, out_dim) block -- no lane padding,
    # so no 8x HBM write amplification and no post-kernel slice kernel.
    out = jnp.dot(h.astype(jnp.bfloat16), wo_ref[...],
                  preferred_element_type=jnp.float32) + bo_ref[...]
    o_ref[...] = out.astype(o_ref.dtype)


def prepare_params(params):
    """Hoisted weight prep: bf16 weight cast + bias/LN packing.  Call once after
    init / param update, NOT per forward call (removes per-call XLA cast/pad kernels)."""
    h = params["wi"].shape[1]
    vecs = jnp.concatenate(
        [params["bi"], params["b1"], params["g1"], params["be1"],
         params["b2"], params["g2"], params["be2"],
         jnp.zeros((1, h), jnp.float32)], axis=0)          # (8, h): sublane-aligned tile
    return {
        "wi": params["wi"].astype(jnp.bfloat16),
        "w1": params["w1"].astype(jnp.bfloat16),
        "w2": params["w2"].astype(jnp.bfloat16),
        "wo": params["wo"].astype(jnp.bfloat16),
        "vecs": vecs,                # (8, h) f32
        "bo": params["bo"],          # (1, out_dim) f32
    }


def tower_encoder(x, p, *, tile_b=None):
    """x: (B, input_dim) float32. p: output of prepare_params()."""
    B, in_dim = x.shape
    h_dim = p["wi"].shape[1]
    out_dim = p["wo"].shape[1]

    if tile_b is None:
        # Even grid of >= 2 steps (pipelining; v7x: equal work on both TensorCores),
        # tiles up to 2048 rows (past the 512-1024 HBM-roofline knee), quantized to
        # 256 rows when large enough (full 256-wide MXU M pass), else to 8 rows.
        n_steps = pl.cdiv(B, 2048)
        n_steps += n_steps & 1
        n_steps = max(2, n_steps)
        base = pl.cdiv(B, n_steps)
        quantum = 256 if base >= 256 else 8
        tile_b = pl.cdiv(base, quantum) * quantum

    B_pad = pl.cdiv(B, tile_b) * tile_b
    # Pad batch so the remainder tile never pushes stale VMEM rows through LayerNorm.
    if B_pad != B:
        x = jnp.pad(x, ((0, B_pad - B), (0, 0)))

    ordered = [p["wi"], p["w1"], p["w2"], p["wo"], p["vecs"], p["bo"]]

    def resident_spec(arr):
        # Constant index map: block stays resident across grid steps (no re-DMA).
        # TODO(synk): at production hidden sizes on v7x (64 MiB VMEM), single-buffer these
        # resident blocks (pipeline_mode=pl.Buffered(1)) to drop the second buffer copy;
        # negligible at h=32 so kept on the default (compile-safe) path here.
        nd = arr.ndim
        return pl.BlockSpec(arr.shape, lambda i, _nd=nd: (0,) * _nd)

    grid = (B_pad // tile_b,)
    in_specs = [pl.BlockSpec((tile_b, in_dim), lambda i: (i, 0))]
    in_specs += [resident_spec(a) for a in ordered]
    out_spec = pl.BlockSpec((tile_b, out_dim), lambda i: (i, 0))

    # Generation-aware VMEM budget: ~80% of physical cap (v5e/v6e 128 MiB -> ~102 MiB,
    # v7x 64 MiB -> ~51 MiB), but never more than 2x the actual footprint (>= 4 MiB).
    try:
        vmem_cap = int(pltpu.get_tpu_info().vmem_capacity_bytes)
    except Exception:
        vmem_cap = 64 * 1024 * 1024   # conservative: smallest (v7x) VMEM
    stream_bytes = 2 * 2 * tile_b * (in_dim + out_dim) * 4         # double-buffered x/out
    param_bytes = 2 * sum(int(a.size) * a.dtype.itemsize for a in ordered)
    interm_bytes = 6 * tile_b * h_dim * 4
    vmem_limit = int(min(int(0.8 * vmem_cap),
                         max(4 * 1024 * 1024,
                             2 * (stream_bytes + param_bytes + interm_bytes))))

    out = pl.pallas_call(
        tower_kernel,
        out_shape=jax.ShapeDtypeStruct((B_pad, out_dim), x.dtype),
        grid_spec=pltpu.PrefetchScalarGridSpec(
            num_scalar_prefetch=0,
            grid=grid,
            in_specs=in_specs,
            out_specs=out_spec,
        ),
        compiler_params=pltpu.CompilerParams(
            dimension_semantics=("parallel",),
            vmem_limit_bytes=vmem_limit),
    )(x, *ordered)

    return out if B_pad == B else out[:B]


def _trunc_normal(key, shape, std=0.02):
    # matches nn.init.trunc_normal_(std=0.02, a=-2*std, b=2*std) distributionally
    return std * jax.random.truncated_normal(key, -2.0, 2.0, shape, jnp.float32)


def init_params(key, input_dim, hidden_dims, output_dim):
    assert len(hidden_dims) == 3 and hidden_dims[0] == hidden_dims[1] == hidden_dims[2], \
        "this script instantiates 2 TowerBlocks with equal hidden sizes (residual requires it)"
    h = hidden_dims[0]
    ks = jax.random.split(key, 4)
    return {
        # input projector: Linear(input_dim, h); bias zeros per _init_weights
        "wi": _trunc_normal(ks[0], (input_dim, h)),
        "bi": jnp.zeros((1, h), jnp.float32),
        # TowerBlock 1
        "w1": _trunc_normal(ks[1], (h, h)),
        "b1": jnp.zeros((1, h), jnp.float32),
        "g1": jnp.ones((1, h), jnp.float32),
        "be1": jnp.zeros((1, h), jnp.float32),
        # TowerBlock 2
        "w2": _trunc_normal(ks[2], (h, h)),
        "b2": jnp.zeros((1, h), jnp.float32),
        "g2": jnp.ones((1, h), jnp.float32),
        "be2": jnp.zeros((1, h), jnp.float32),
        # output projector: Linear(h, output_dim)
        "wo": _trunc_normal(ks[3], (h, output_dim)),
        "bo": jnp.zeros((1, output_dim), jnp.float32),
    }


def reference(x, p):
    """Pure-JAX f32 reference of the PyTorch forward (for sanity checking)."""
    h = x @ p["wi"] + p["bi"]

    def blk(h, w, b, g, be):
        y = jnp.maximum(h @ w + b, 0.0) + h
        m = jnp.mean(y, axis=-1, keepdims=True)
        v = jnp.mean((y - m) ** 2, axis=-1, keepdims=True)
        return (y - m) / jnp.sqrt(v + EPS) * g + be

    h = blk(h, p["w1"], p["b1"], p["g1"], p["be1"])
    h = blk(h, p["w2"], p["b2"], p["g2"], p["be2"])
    return h @ p["wo"] + p["bo"]


if __name__ == "__main__":
    key = jax.random.PRNGKey(0)
    k_x, k_p = jax.random.split(key)

    batch = 256                  # -> tile_b=128, grid=(2,): even grid, both v7x TCs busy
    input_dim = 16
    hidden_dims = [32, 32, 32]   # -> 2 TowerBlocks
    output_dim = 16

    x = jax.random.normal(k_x, (batch, input_dim), jnp.float32)
    params = init_params(k_p, input_dim, hidden_dims, output_dim)
    prepped = prepare_params(params)   # hoisted weight prep: once, not per forward call

    out = tower_encoder(x, prepped)
    out = jax.block_until_ready(out)

    ref = reference(x, params)
    assert out.shape == (batch, output_dim)
    # bf16 MXU inputs -> allow bf16-level quantization error vs. the f32 reference
    assert jnp.allclose(out, ref, atol=2e-2, rtol=2e-2), \
        f"max abs err {jnp.max(jnp.abs(out - ref))}"

    print("KERNEL_OK")
</pallas_src>

<mosaic_0001>
module attributes {stable_mosaic.version = 11 : i64} {
  func.func @tower_kernel(%arg0: i32, %arg1: memref<128x16xf32, #tpu.memory_space<vmem>>, %arg2: memref<16x32xbf16, #tpu.memory_space<vmem>>, %arg3: memref<32x32xbf16, #tpu.memory_space<vmem>>, %arg4: memref<32x32xbf16, #tpu.memory_space<vmem>>, %arg5: memref<32x16xbf16, #tpu.memory_space<vmem>>, %arg6: memref<8x32xf32, #tpu.memory_space<vmem>>, %arg7: memref<1x16xf32, #tpu.memory_space<vmem>>, %arg8: memref<128x16xf32, #tpu.memory_space<vmem>>) attributes {dimension_semantics = [#tpu.dimension_semantics<parallel>], iteration_bounds = array<i64: 2>, scalar_prefetch = 0 : i64, scratch_operands = 0 : i64, tpu.core_type = #tpu.core_type<tc>, window_params = [{transform_indices = @transform_0, window_bounds = array<i64: 128, 16>}, {pipeline_mode = #tpu.pipeline_mode<synchronous>, transform_indices = @transform_1, window_bounds = array<i64: 16, 32>}, {pipeline_mode = #tpu.pipeline_mode<synchronous>, transform_indices = @transform_2, window_bounds = array<i64: 32, 32>}, {pipeline_mode = #tpu.pipeline_mode<synchronous>, transform_indices = @transform_3, window_bounds = array<i64: 32, 32>}, {pipeline_mode = #tpu.pipeline_mode<synchronous>, transform_indices = @transform_4, window_bounds = array<i64: 32, 16>}, {pipeline_mode = #tpu.pipeline_mode<synchronous>, transform_indices = @transform_5, window_bounds = array<i64: 8, 32>}, {pipeline_mode = #tpu.pipeline_mode<synchronous>, transform_indices = @transform_6, window_bounds = array<i64: 1, 16>}, {transform_indices = @transform_7, window_bounds = array<i64: 128, 16>}]} {
    %c0 = arith.constant 0 : index
    %c0_0 = arith.constant 0 : index
    %0 = vector.load %arg6[%c0, %c0_0] : memref<8x32xf32, #tpu.memory_space<vmem>>, vector<8x32xf32>
    %1 = vector.extract_strided_slice %0 {offsets = [0, 0], sizes = [1, 32], strides = [1, 1]} : vector<8x32xf32> to vector<1x32xf32>
    %2 = vector.extract_strided_slice %0 {offsets = [1, 0], sizes = [1, 32], strides = [1, 1]} : vector<8x32xf32> to vector<1x32xf32>
    %3 = vector.extract_strided_slice %0 {offsets = [2, 0], sizes = [1, 32], strides = [1, 1]} : vector<8x32xf32> to vector<1x32xf32>
    %4 = vector.extract_strided_slice %0 {offsets = [3, 0], sizes = [1, 32], strides = [1, 1]} : vector<8x32xf32> to vector<1x32xf32>
    %5 = vector.extract_strided_slice %0 {offsets = [4, 0], sizes = [1, 32], strides = [1, 1]} : vector<8x32xf32> to vector<1x32xf32>
    %6 = vector.extract_strided_slice %0 {offsets = [5, 0], sizes = [1, 32], strides = [1, 1]} : vector<8x32xf32> to vector<1x32xf32>
    %7 = vector.extract_strided_slice %0 {offsets = [6, 0], sizes = [1, 32], strides = [1, 1]} : vector<8x32xf32> to vector<1x32xf32>
    %c0_1 = arith.constant 0 : index
    %c0_2 = arith.constant 0 : index
    %8 = vector.load %arg1[%c0_1, %c0_2] : memref<128x16xf32, #tpu.memory_space<vmem>>, vector<128x16xf32>
    %9 = arith.truncf %8 : vector<128x16xf32> to vector<128x16xbf16>
    %c0_3 = arith.constant 0 : index
    %c0_4 = arith.constant 0 : index
    %10 = vector.load %arg2[%c0_3, %c0_4] : memref<16x32xbf16, #tpu.memory_space<vmem>>, vector<16x32xbf16>
    %cst = arith.constant dense<0.000000e+00> : vector<128x32xf32>
    %11 = tpu.matmul %9, %10, %cst {dimension_numbers = #tpu.dot_dimension_numbers<[1], [0], [0], [1], [0, 0, 1, 1], [], []>} : vector<128x16xbf16>, vector<16x32xbf16>, vector<128x32xf32> -> vector<128x32xf32>
    %12 = vector.broadcast %1 : vector<1x32xf32> to vector<128x32xf32>
    %13 = arith.addf %11, %12 : vector<128x32xf32>
    %c0_5 = arith.constant 0 : index
    %c0_6 = arith.constant 0 : index
    %14 = vector.load %arg3[%c0_5, %c0_6] : memref<32x32xbf16, #tpu.memory_space<vmem>>, vector<32x32xbf16>
    %15 = arith.truncf %13 : vector<128x32xf32> to vector<128x32xbf16>
    %cst_7 = arith.constant dense<0.000000e+00> : vector<128x32xf32>
    %16 = tpu.matmul %15, %14, %cst_7 {dimension_numbers = #tpu.dot_dimension_numbers<[1], [0], [0], [1], [0, 0, 1, 1], [], []>} : vector<128x32xbf16>, vector<32x32xbf16>, vector<128x32xf32> -> vector<128x32xf32>
    %17 = vector.broadcast %2 : vector<1x32xf32> to vector<128x32xf32>
    %18 = arith.addf %16, %17 : vector<128x32xf32>
    %cst_8 = arith.constant 0.000000e+00 : f32
    %19 = vector.broadcast %cst_8 : f32 to vector<128x32xf32>
    %20 = arith.maximumf %18, %19 : vector<128x32xf32>
    %21 = arith.addf %20, %13 : vector<128x32xf32>
    %cst_9 = arith.constant dense<0.000000e+00> : vector<128xf32>
    %22 = vector.multi_reduction <add>, %21, %cst_9 [1] : vector<128x32xf32> to vector<128xf32>
    %23 = vector.shape_cast %22 : vector<128xf32> to vector<128x1xf32>
    %cst_10 = arith.constant 3.200000e+01 : f32
    %24 = vector.broadcast %cst_10 : f32 to vector<128x1xf32>
    %25 = arith.divf %23, %24 : vector<128x1xf32>
    %26 = arith.mulf %21, %21 : vector<128x32xf32>
    %cst_11 = arith.constant dense<0.000000e+00> : vector<128xf32>
    %27 = vector.multi_reduction <add>, %26, %cst_11 [1] : vector<128x32xf32> to vector<128xf32>
    %28 = vector.shape_cast %27 : vector<128xf32> to vector<128x1xf32>
    %cst_12 = arith.constant 3.200000e+01 : f32
    %29 = vector.broadcast %cst_12 : f32 to vector<128x1xf32>
    %30 = arith.divf %28, %29 : vector<128x1xf32>
    %31 = arith.mulf %25, %25 : vector<128x1xf32>
    %32 = arith.subf %30, %31 : vector<128x1xf32>
    %cst_13 = arith.constant 0.000000e+00 : f32
    %33 = vector.broadcast %cst_13 : f32 to vector<128x1xf32>
    %34 = arith.maximumf %32, %33 : vector<128x1xf32>
    %35 = vector.broadcast %25 : vector<128x1xf32> to vector<128x32xf32>
    %36 = arith.subf %21, %35 : vector<128x32xf32>
    %cst_14 = arith.constant 9.99999996E-13 : f32
    %37 = vector.broadcast %cst_14 : f32 to vector<128x1xf32>
    %38 = arith.addf %34, %37 : vector<128x1xf32>
    %39 = math.rsqrt %38 : vector<128x1xf32>
    %40 = vector.broadcast %39 : vector<128x1xf32> to vector<128x32xf32>
    %41 = arith.mulf %36, %40 : vector<128x32xf32>
    %42 = vector.broadcast %3 : vector<1x32xf32> to vector<128x32xf32>
    %43 = arith.mulf %41, %42 : vector<128x32xf32>
    %44 = vector.broadcast %4 : vector<1x32xf32> to vector<128x32xf32>
    %45 = arith.addf %43, %44 : vector<128x32xf32>
    %c0_15 = arith.constant 0 : index
    %c0_16 = arith.constant 0 : index
    %46 = vector.load %arg4[%c0_15, %c0_16] : memref<32x32xbf16, #tpu.memory_space<vmem>>, vector<32x32xbf16>
    %47 = arith.truncf %45 : vector<128x32xf32> to vector<128x32xbf16>
    %cst_17 = arith.constant dense<0.000000e+00> : vector<128x32xf32>
    %48 = tpu.matmul %47, %46, %cst_17 {dimension_numbers = #tpu.dot_dimension_numbers<[1], [0], [0], [1], [0, 0, 1, 1], [], []>} : vector<128x32xbf16>, vector<32x32xbf16>, vector<128x32xf32> -> vector<128x32xf32>
    %49 = vector.broadcast %5 : vector<1x32xf32> to vector<128x32xf32>
    %50 = arith.addf %48, %49 : vector<128x32xf32>
    %cst_18 = arith.constant 0.000000e+00 : f32
    %51 = vector.broadcast %cst_18 : f32 to vector<128x32xf32>
    %52 = arith.maximumf %50, %51 : vector<128x32xf32>
    %53 = arith.addf %52, %45 : vector<128x32xf32>
    %cst_19 = arith.constant dense<0.000000e+00> : vector<128xf32>
    %54 = vector.multi_reduction <add>, %53, %cst_19 [1] : vector<128x32xf32> to vector<128xf32>
    %55 = vector.shape_cast %54 : vector<128xf32> to vector<128x1xf32>
    %cst_20 = arith.constant 3.200000e+01 : f32
    %56 = vector.broadcast %cst_20 : f32 to vector<128x1xf32>
    %57 = arith.divf %55, %56 : vector<128x1xf32>
    %58 = arith.mulf %53, %53 : vector<128x32xf32>
    %cst_21 = arith.constant dense<0.000000e+00> : vector<128xf32>
    %59 = vector.multi_reduction <add>, %58, %cst_21 [1] : vector<128x32xf32> to vector<128xf32>
    %60 = vector.shape_cast %59 : vector<128xf32> to vector<128x1xf32>
    %cst_22 = arith.constant 3.200000e+01 : f32
    %61 = vector.broadcast %cst_22 : f32 to vector<128x1xf32>
    %62 = arith.divf %60, %61 : vector<128x1xf32>
    %63 = arith.mulf %57, %57 : vector<128x1xf32>
    %64 = arith.subf %62, %63 : vector<128x1xf32>
    %cst_23 = arith.constant 0.000000e+00 : f32
    %65 = vector.broadcast %cst_23 : f32 to vector<128x1xf32>
    %66 = arith.maximumf %64, %65 : vector<128x1xf32>
    %67 = vector.broadcast %57 : vector<128x1xf32> to vector<128x32xf32>
    %68 = arith.subf %53, %67 : vector<128x32xf32>
    %cst_24 = arith.constant 9.99999996E-13 : f32
    %69 = vector.broadcast %cst_24 : f32 to vector<128x1xf32>
    %70 = arith.addf %66, %69 : vector<128x1xf32>
    %71 = math.rsqrt %70 : vector<128x1xf32>
    %72 = vector.broadcast %71 : vector<128x1xf32> to vector<128x32xf32>
    %73 = arith.mulf %68, %72 : vector<128x32xf32>
    %74 = vector.broadcast %6 : vector<1x32xf32> to vector<128x32xf32>
    %75 = arith.mulf %73, %74 : vector<128x32xf32>
    %76 = vector.broadcast %7 : vector<1x32xf32> to vector<128x32xf32>
    %77 = arith.addf %75, %76 : vector<128x32xf32>
    %78 = arith.truncf %77 : vector<128x32xf32> to vector<128x32xbf16>
    %c0_25 = arith.constant 0 : index
    %c0_26 = arith.constant 0 : index
    %79 = vector.load %arg5[%c0_25, %c0_26] : memref<32x16xbf16, #tpu.memory_space<vmem>>, vector<32x16xbf16>
    %cst_27 = arith.constant dense<0.000000e+00> : vector<128x16xf32>
    %80 = tpu.matmul %78, %79, %cst_27 {dimension_numbers = #tpu.dot_dimension_numbers<[1], [0], [0], [1], [0, 0, 1, 1], [], []>} : vector<128x32xbf16>, vector<32x16xbf16>, vector<128x16xf32> -> vector<128x16xf32>
    %c0_28 = arith.constant 0 : index
    %c0_29 = arith.constant 0 : index
    %81 = vector.load %arg7[%c0_28, %c0_29] : memref<1x16xf32, #tpu.memory_space<vmem>>, vector<1x16xf32>
    %82 = vector.broadcast %81 : vector<1x16xf32> to vector<128x16xf32>
    %83 = arith.addf %80, %82 : vector<128x16xf32>
    %c0_30 = arith.constant 0 : index
    %c0_31 = arith.constant 0 : index
    %84 = vector.load %arg8[%c0_30, %c0_31] : memref<128x16xf32, #tpu.memory_space<vmem>>, vector<128x16xf32>
    tpu.vector_store %arg8[%c0_30, %c0_31], %83 {strides = array<i32>} : memref<128x16xf32, #tpu.memory_space<vmem>>, vector<128x16xf32>,
    return
  }
  func.func @transform_0(%arg0: i32) -> (i32, i32) {
    %c0_i32 = arith.constant 0 : i32
    %c0_i32_0 = arith.constant 0 : i32
    return %arg0, %c0_i32 : i32, i32
  }
  func.func @transform_1(%arg0: i32) -> (i32, i32) {
    %c0_i32 = arith.constant 0 : i32
    %c0_i32_0 = arith.constant 0 : i32
    %c0_i32_1 = arith.constant 0 : i32
    return %c0_i32, %c0_i32_0 : i32, i32
  }
  func.func @transform_2(%arg0: i32) -> (i32, i32) {
    %c0_i32 = arith.constant 0 : i32
    %c0_i32_0 = arith.constant 0 : i32
    %c0_i32_1 = arith.constant 0 : i32
    return %c0_i32, %c0_i32_0 : i32, i32
  }
  func.func @transform_3(%arg0: i32) -> (i32, i32) {
    %c0_i32 = arith.constant 0 : i32
    %c0_i32_0 = arith.constant 0 : i32
    %c0_i32_1 = arith.constant 0 : i32
    return %c0_i32, %c0_i32_0 : i32, i32
  }
  func.func @transform_4(%arg0: i32) -> (i32, i32) {
    %c0_i32 = arith.constant 0 : i32
    %c0_i32_0 = arith.constant 0 : i32
    %c0_i32_1 = arith.constant 0 : i32
    return %c0_i32, %c0_i32_0 : i32, i32
  }
  func.func @transform_5(%arg0: i32) -> (i32, i32) {
    %c0_i32 = arith.constant 0 : i32
    %c0_i32_0 = arith.constant 0 : i32
    %c0_i32_1 = arith.constant 0 : i32
    return %c0_i32, %c0_i32_0 : i32, i32
  }
  func.func @transform_6(%arg0: i32) -> (i32, i32) {
    %c0_i32 = arith.constant 0 : i32
    %c0_i32_0 = arith.constant 0 : i32
    %c0_i32_1 = arith.constant 0 : i32
    return %c0_i32, %c0_i32_0 : i32, i32
  }
  func.func @transform_7(%arg0: i32) -> (i32, i32) {
    %c0_i32 = arith.constant 0 : i32
    %c0_i32_0 = arith.constant 0 : i32
    return %arg0, %c0_i32 : i32, i32
  }
}

</mosaic_0001>

<llo_original>
// kernel: tpu_custom_call.1
$region0: #{tpu_custom_call.1}
  #allocation0 [shape = 'u32[]', space=smem, size = 0x4, offset = 0x4, fixed_abs, tag = 'smem constant byte address 0x4 - core index']
  #allocation1 [shape = 'u32[72,128]{1,0:T(1,128)}', space=vmem, size = 0x9000, scoped, tag = 'internal scratch']
  %s0 = inlined_call_operand.vmem [shape: f32[256,16], index: 0, kind: input, shape index: {}]
  %s1 = inlined_call_operand.vmem [shape: bf16[16,32], index: 1, kind: input, shape index: {}]
  %s2 = inlined_call_operand.vmem [shape: bf16[32,32], index: 2, kind: input, shape index: {}]
  %s3 = inlined_call_operand.vmem [shape: bf16[32,32], index: 3, kind: input, shape index: {}]
  %s4 = inlined_call_operand.vmem [shape: bf16[32,16], index: 4, kind: input, shape index: {}]
  %s5 = inlined_call_operand.vmem [shape: f32[8,32], index: 5, kind: input, shape index: {}]
  %s6 = inlined_call_operand.vmem [shape: f32[1,16], index: 6, kind: input, shape index: {}]
  %s7 = inlined_call_operand.vmem [shape: f32[256,16], index: 7, kind: output, shape index: {}]
  %s8 = sld [smem:[#allocation0]]
  $region61: #{tpu_custom_call.1} parent=0
    _
  %s10 = ssub.s32 1, %s8
  %s11 = scalar_select 0, %s10, %s8
  loop: start=0, step=1, limit=4
  $region2: #{tpu_custom_call.1} parent=0 // loop_pre_header
    _
  $region3: #{tpu_custom_call.1} parent=0 // loop_header
    %s13 = sphi 0, %s17
    %p14 = scmp.ge.s32.totalorder %s13, 4
    %s23 = sphi 0, %s25
    %s26 = sphi 0, %s23
    %s27 = sphi 0, %s26
    %s43 = sphi 0, %s27
    %s47 = sphi 0, %s47
    %s49 = sphi 0, %s47
    %s50 = sphi 0, %s49
    %s64 = sphi 0, %s50
    %s68 = sphi 0, %s68
    %s70 = sphi 0, %s68
    %s71 = sphi 0, %s70
    %s85 = sphi 0, %s71
    %s89 = sphi 0, %s89
    %s91 = sphi 0, %s89
    %s92 = sphi 0, %s91
    %s106 = sphi 0, %s92
    %s110 = sphi 0, %s110
    %s112 = sphi 0, %s110
    %s113 = sphi 0, %s112
    %s127 = sphi 0, %s113
    %s131 = sphi 0, %s131
    %s133 = sphi 0, %s131
    %s134 = sphi 0, %s133
    %s148 = sphi 0, %s134
    %s152 = sphi 0, %s152
    %s154 = sphi 0, %s152
    %s155 = sphi 0, %s154
    %s169 = sphi 0, %s155
    %s175 = sphi 0, %s177
    %s178 = sphi 0, %s175
    %s179 = sphi 0, %s178
    %s195 = sphi 0, %s179
  $region4: #{tpu_custom_call.1} parent=0 // loop_header_branch
    %16 = sbr.rel (%p14) target = $region8
  $region5: #{tpu_custom_call.1} parent=0 // loop_body
    %s18 = ssub.s32 %s13, 1
    %s19 = ssub.s32 %s13, 2
    %s20 = sadd.s32 %s13, 1
    %s21 = ssub.s32 %s13, %s20
    %p22 = scmp.eq.s32.totalorder %s21, 0
    %s24 = sadd.s32 %s23, 1
    %s25 = scalar_select %p22, %s23, %s24
    %p28 = pneg %p22
    %p29 = scmp.eq.s32.totalorder %s13, 1
    %p30 = por %p28, %p29
    %p31 = scmp.ne.s32.totalorder %s23, %s26
    %p32 = scmp.eq.s32.totalorder %s13, 0
    %p33 = por %p31, %p32
    %p34 = scmp.ne.s32.totalorder %s23, %s26
    %p35 = scmp.eq.s32.totalorder %s18, 1
    %p36 = por %p34, %p35
    %p37 = scmp.ne.s32.totalorder %s26, %s27
    %p38 = scmp.eq.s32.totalorder %s18, 0
    %p39 = por %p37, %p38
    %p40 = scmp.ne.s32.totalorder %s26, %s27
    %p41 = scmp.eq.s32.totalorder %s19, 1
    %p42 = por %p40, %p41
    %p44 = scmp.ne.s32.totalorder %s27, %s43
    %p45 = scmp.eq.s32.totalorder %s19, 0
    %p46 = por %p44, %p45
    %s48 = sadd.s32 %s47, 1
    %p51 = scmp.eq.s32.totalorder %s13, 1
    %p52 = scmp.ne.s32.totalorder %s47, %s49
    %p53 = scmp.eq.s32.totalorder %s13, 0
    %p54 = por %p52, %p53
    %p55 = scmp.ne.s32.totalorder %s47, %s49
    %p56 = scmp.eq.s32.totalorder %s18, 1
    %p57 = por %p55, %p56
    %p58 = scmp.ne.s32.totalorder %s49, %s50
    %p59 = scmp.eq.s32.totalorder %s18, 0
    %p60 = por %p58, %p59
    %p61 = scmp.ne.s32.totalorder %s49, %s50
    %p62 = scmp.eq.s32.totalorder %s19, 1
    %p63 = por %p61, %p62
    %p65 = scmp.ne.s32.totalorder %s50, %s64
    %p66 = scmp.eq.s32.totalorder %s19, 0
    %p67 = por %p65, %p66
    %s69 = sadd.s32 %s68, 1
    %p72 = scmp.eq.s32.totalorder %s13, 1
    %p73 = scmp.ne.s32.totalorder %s68, %s70
    %p74 = scmp.eq.s32.totalorder %s13, 0
    %p75 = por %p73, %p74
    %p76 = scmp.ne.s32.totalorder %s68, %s70
    %p77 = scmp.eq.s32.totalorder %s18, 1
    %p78 = por %p76, %p77
    %p79 = scmp.ne.s32.totalorder %s70, %s71
    %p80 = scmp.eq.s32.totalorder %s18, 0
    %p81 = por %p79, %p80
    %p82 = scmp.ne.s32.totalorder %s70, %s71
    %p83 = scmp.eq.s32.totalorder %s19, 1
    %p84 = por %p82, %p83
    %p86 = scmp.ne.s32.totalorder %s71, %s85
    %p87 = scmp.eq.s32.totalorder %s19, 0
    %p88 = por %p86, %p87
    %s90 = sadd.s32 %s89, 1
    %p93 = scmp.eq.s32.totalorder %s13, 1
    %p94 = scmp.ne.s32.totalorder %s89, %s91
    %p95 = scmp.eq.s32.totalorder %s13, 0
    %p96 = por %p94, %p95
    %p97 = scmp.ne.s32.totalorder %s89, %s91
    %p98 = scmp.eq.s32.totalorder %s18, 1
    %p99 = por %p97, %p98
    %p100 = scmp.ne.s32.totalorder %s91, %s92
    %p101 = scmp.eq.s32.totalorder %s18, 0
    %p102 = por %p100, %p101
    %p103 = scmp.ne.s32.totalorder %s91, %s92
    %p104 = scmp.eq.s32.totalorder %s19, 1
    %p105 = por %p103, %p104
    %p107 = scmp.ne.s32.totalorder %s92, %s106
    %p108 = scmp.eq.s32.totalorder %s19, 0
    %p109 = por %p107, %p108
    %s111 = sadd.s32 %s110, 1
    %p114 = scmp.eq.s32.totalorder %s13, 1
    %p115 = scmp.ne.s32.totalorder %s110, %s112
    %p116 = scmp.eq.s32.totalorder %s13, 0
    %p117 = por %p115, %p116
    %p118 = scmp.ne.s32.totalorder %s110, %s112
    %p119 = scmp.eq.s32.totalorder %s18, 1
    %p120 = por %p118, %p119
    %p121 = scmp.ne.s32.totalorder %s112, %s113
    %p122 = scmp.eq.s32.totalorder %s18, 0
    %p123 = por %p121, %p122
    %p124 = scmp.ne.s32.totalorder %s112, %s113
    %p125 = scmp.eq.s32.totalorder %s19, 1
    %p126 = por %p124, %p125
    %p128 = scmp.ne.s32.totalorder %s113, %s127
    %p129 = scmp.eq.s32.totalorder %s19, 0
    %p130 = por %p128, %p129
    %s132 = sadd.s32 %s131, 1
    %p135 = scmp.eq.s32.totalorder %s13, 1
    %p136 = scmp.ne.s32.totalorder %s131, %s133
    %p137 = scmp.eq.s32.totalorder %s13, 0
    %p138 = por %p136, %p137
    %p139 = scmp.ne.s32.totalorder %s131, %s133
    %p140 = scmp.eq.s32.totalorder %s18, 1
    %p141 = por %p139, %p140
    %p142 = scmp.ne.s32.totalorder %s133, %s134
    %p143 = scmp.eq.s32.totalorder %s18, 0
    %p144 = por %p142, %p143
    %p145 = scmp.ne.s32.totalorder %s133, %s134
    %p146 = scmp.eq.s32.totalorder %s19, 1
    %p147 = por %p145, %p146
    %p149 = scmp.ne.s32.totalorder %s134, %s148
    %p150 = scmp.eq.s32.totalorder %s19, 0
    %p151 = por %p149, %p150
    %s153 = sadd.s32 %s152, 1
    %p156 = scmp.eq.s32.totalorder %s13, 1
    %p157 = scmp.ne.s32.totalorder %s152, %s154
    %p158 = scmp.eq.s32.totalorder %s13, 0
    %p159 = por %p157, %p158
    %p160 = scmp.ne.s32.totalorder %s152, %s154
    %p161 = scmp.eq.s32.totalorder %s18, 1
    %p162 = por %p160, %p161
    %p163 = scmp.ne.s32.totalorder %s154, %s155
    %p164 = scmp.eq.s32.totalorder %s18, 0
    %p165 = por %p163, %p164
    %p166 = scmp.ne.s32.totalorder %s154, %s155
    %p167 = scmp.eq.s32.totalorder %s19, 1
    %p168 = por %p166, %p167
    %p170 = scmp.ne.s32.totalorder %s155, %s169
    %p171 = scmp.eq.s32.totalorder %s19, 0
    %p172 = por %p170, %p171
    %s173 = ssub.s32 %s13, %s20
    %p174 = scmp.eq.s32.totalorder %s173, 0
    %s176 = sadd.s32 %s175, 1
    %s177 = scalar_select %p174, %s175, %s176
    %p180 = pneg %p174
    %p181 = scmp.eq.s32.totalorder %s13, 1
    %p182 = por %p180, %p181
    %p183 = scmp.ne.s32.totalorder %s175, %s178
    %p184 = scmp.eq.s32.totalorder %s13, 0
    %p185 = por %p183, %p184
    %p186 = scmp.ne.s32.totalorder %s175, %s178
    %p187 = scmp.eq.s32.totalorder %s18, 1
    %p188 = por %p186, %p187
    %p189 = scmp.ne.s32.totalorder %s178, %s179
    %p190 = scmp.eq.s32.totalorder %s18, 0
    %p191 = por %p189, %p190
    %p192 = scmp.ne.s32.totalorder %s178, %s179
    %p193 = scmp.eq.s32.totalorder %s19, 1
    %p194 = por %p192, %p193
    %p196 = scmp.ne.s32.totalorder %s179, %s195
    %p197 = scmp.eq.s32.totalorder %s19, 0
    %p198 = por %p196, %p197
    %p199 = scmp.le.s32.totalorder 1, %s13
    %p200 = scmp.lt.s32.totalorder %s13, 3
    %p201 = pnand %p199, %p200
    %p202 = pneg %p201
    // Predicated region
    $region9: #{tpu_custom_call.1} parent=5 // pred_check
      _
    $region10: #{tpu_custom_call.1} parent=5 // pred_check_branch
      %204 = sbr.rel (%p201) target = $region12
    $region11: #{tpu_custom_call.1} parent=5 // pred_region
      %s205 = ssub.s32 %s13, 1
      // Predicated region
      $region13: #{tpu_custom_call.1} parent=11 // pred_check
        %p206 = pneg %p60
      $region14: #{tpu_custom_call.1} parent=11 // pred_check_branch
        %208 = sbr.rel (%p206) target = $region16
      $region15: #{tpu_custom_call.1} parent=11 // pred_region
        _
      $region16: #{tpu_custom_call.1} parent=11 // pred_fallthru
        _
      // Predicated region
      $region17: #{tpu_custom_call.1} parent=11 // pred_check
        %p209 = pneg %p81
      $region18: #{tpu_custom_call.1} parent=11 // pred_check_branch
        %211 = sbr.rel (%p209) target = $region20
      $region19: #{tpu_custom_call.1} parent=11 // pred_region
        _
      $region20: #{tpu_custom_call.1} parent=11 // pred_fallthru
        _
      // Predicated region
      $region21: #{tpu_custom_call.1} parent=11 // pred_check
        %p212 = pneg %p102
      $region22: #{tpu_custom_call.1} parent=11 // pred_check_branch
        %214 = sbr.rel (%p212) target = $region24
      $region23: #{tpu_custom_call.1} parent=11 // pred_region
        _
      $region24: #{tpu_custom_call.1} parent=11 // pred_fallthru
        _
      // Predicated region
      $region25: #{tpu_custom_call.1} parent=11 // pred_check
        %p215 = pneg %p123
      $region26: #{tpu_custom_call.1} parent=11 // pred_check_branch
        %217 = sbr.rel (%p215) target = $region28
      $region27: #{tpu_custom_call.1} parent=11 // pred_region
        _
      $region28: #{tpu_custom_call.1} parent=11 // pred_fallthru
        _
      // Predicated region
      $region29: #{tpu_custom_call.1} parent=11 // pred_check
        %p218 = pneg %p144
      $region30: #{tpu_custom_call.1} parent=11 // pred_check_branch
        %220 = sbr.rel (%p218) target = $region32
      $region31: #{tpu_custom_call.1} parent=11 // pred_region
        _
      $region32: #{tpu_custom_call.1} parent=11 // pred_fallthru
        _
      // Predicated region
      $region33: #{tpu_custom_call.1} parent=11 // pred_check
        %p221 = pneg %p165
      $region34: #{tpu_custom_call.1} parent=11 // pred_check_branch
        %223 = sbr.rel (%p221) target = $region36
      $region35: #{tpu_custom_call.1} parent=11 // pred_region
        _
      $region36: #{tpu_custom_call.1} parent=11 // pred_fallthru
        _
    $region12: #{tpu_custom_call.1} parent=5 // pred_fallthru
      _
    %p224 = scmp.lt.s32.totalorder %s13, 2
    // Predicated region
    $region37: #{tpu_custom_call.1} parent=5 // pred_check
      %p225 = pneg %p224
    $region38: #{tpu_custom_call.1} parent=5 // pred_check_branch
      %227 = sbr.rel (%p225) target = $region40
    $region39: #{tpu_custom_call.1} parent=5 // pred_region
      // Predicated region
      $region41: #{tpu_custom_call.1} parent=39 // pred_check
        %p228 = pneg %p33
      $region42: #{tpu_custom_call.1} parent=39 // pred_check_branch
        %230 = sbr.rel (%p228) target = $region44
      $region43: #{tpu_custom_call.1} parent=39 // pred_region
        %s231 = smul.u32 16, %s13
        %p232 = scmp.lt.s32.totalorder %s231, 31
        %s233 = scalar_select %p232, %s231, 31
        %s234 = smul.addr %s233, 8
        %s235 = scalar_lea.vmem %s0, %s234
        %s236 = smul.u32 16, %s13
      $region44: #{tpu_custom_call.1} parent=39 // pred_fallthru
        _
    $region40: #{tpu_custom_call.1} parent=5 // pred_fallthru
      _
    %p237 = scmp.le.s32.totalorder 1, %s13
    %p238 = scmp.lt.s32.totalorder %s13, 3
    %p239 = pnand %p237, %p238
    %p240 = pneg %p239
    // Predicated region
    $region45: #{tpu_custom_call.1} parent=5 // pred_check
      _
    $region46: #{tpu_custom_call.1} parent=5 // pred_check_branch
      %242 = sbr.rel (%p239) target = $region48
    $region47: #{tpu_custom_call.1} parent=5 // pred_region
      %s243 = ssub.s32 %s13, 1
      %s244 = smul.u32 16, %s18
      %p245 = scmp.lt.s32.totalorder %s244, 31
      %s246 = scalar_select %p245, %s244, 31
      %s247 = smul.addr %s246, 8
      %s248 = scalar_lea.vmem %s0, %s247
      %p249 = pneg %p39
      %p250 = pneg %p36
      %p251 = pneg %p60
      %p252 = pneg %p57
      %p253 = pneg %p81
      %p254 = pneg %p78
      %p255 = pneg %p102
      %p256 = pneg %p99
      %p257 = pneg %p123
      %p258 = pneg %p120
      %p259 = pneg %p144
      %p260 = pneg %p141
      %p261 = pneg %p165
      %p262 = pneg %p162
      %p263 = pneg %p191
      %p264 = pneg %p188
      %s265 = smul.u32 16, %s18
      %p266 = scmp.lt.s32.totalorder %s265, 31
      %s267 = scalar_select %p266, %s265, 31
      %s268 = smul.addr %s267, 8
      %s269 = scalar_lea.vmem %s7, %s268
      %s270 = smul.u32 16, %s18
      %p271 = scmp.lt.s32.totalorder %s270, 31
      %s272 = scalar_select %p271, %s270, 31
      %s273 = smul.addr %s272, 8
      %s274 = scalar_lea.vmem %s0, %s273
      %s275 = smul.u32 16, %s18
      %s276 = smul.u32 16, %s18
      %p277 = scmp.lt.s32.totalorder %s276, 31
      %s278 = scalar_select %p277, %s276, 31
      %s279 = smul.addr %s278, 8
      %s280 = scalar_lea.vmem %s7, %s279
      %s281 = smul.u32 16, %s18
      %v283 = vld [vmem:[%s5] sm:$0xff]
      %v284 = vld [vmem:[%s274] sm:$0xff]
      %v285 = vld [vmem:[%s274 + $0x8] sm:$0xff]
      %v286 = vld [vmem:[%s274 + $0x10] sm:$0xff]
      %v287 = vld [vmem:[%s274 + $0x18] sm:$0xff]
      %v288 = vld [vmem:[%s274 + $0x20] sm:$0xff]
      %v289 = vld [vmem:[%s274 + $0x28] sm:$0xff]
      %v290 = vld [vmem:[%s274 + $0x30] sm:$0xff]
      %v291 = vld [vmem:[%s274 + $0x38] sm:$0xff]
      %v292 = vld [vmem:[%s274 + $0x40] sm:$0xff]
      %v293 = vld [vmem:[%s274 + $0x48] sm:$0xff]
      %v294 = vld [vmem:[%s274 + $0x50] sm:$0xff]
      %v295 = vld [vmem:[%s274 + $0x58] sm:$0xff]
      %v296 = vld [vmem:[%s274 + $0x60] sm:$0xff]
      %v297 = vld [vmem:[%s274 + $0x68] sm:$0xff]
      %v298 = vld [vmem:[%s274 + $0x70] sm:$0xff]
      %v299 = vld [vmem:[%s274 + $0x78] sm:$0xff]
      %v300 = vpack.c.bf16 %v285, %v284
      %v301 = vpack.c.bf16 %v287, %v286
      %v302 = vpack.c.bf16 %v289, %v288
      %v303 = vpack.c.bf16 %v291, %v290
      %v304 = vpack.c.bf16 %v293, %v292
      %v305 = vpack.c.bf16 %v295, %v294
      %v306 = vpack.c.bf16 %v297, %v296
      %v307 = vpack.c.bf16 %v299, %v298
      %v308 = vld [vmem:[%s1] sm:$0xf]
      %v309 = vld [vmem:[%s1 + $0x4] sm:$0xf]
      %v310 = vperm.slane %v283, 0
      %v313 = vunpack.c.l.b16 %v308
      %v314 = vunpack.c.l.b16 %v309
      %v315 = vpack.c.b16 %v314, %v313
      %vm317 = vcmask 130048
      %v319 = vsel %vm317, %v300, 0
      %v322 = vsel %vm317, %v301, 0
      %v325 = vsel %vm317, %v302, 0
      %v328 = vsel %vm317, %v303, 0
      %v331 = vsel %vm317, %v304, 0
      %v334 = vsel %vm317, %v305, 0
      %v337 = vsel %vm317, %v306, 0
      %v340 = vsel %vm317, %v307, 0
      %342 = vmatpush.bf16.msra.mxu0 0
      %343 = vmatpush.bf16.msra.mxu0 0
      %344 = vmatpush.bf16.msra.mxu0 0
      %345 = vmatpush.bf16.msra.mxu0 0
      %346 = vmatpush.bf16.msra.mxu0 0
      %347 = vmatpush.bf16.msra.mxu0 0
      %348 = vmatpush.bf16.msra.mxu0 0
      %349 = vmatpush.bf16.msra.mxu0 %v315
      %350 = vmatmul.bf16.gmra.mxu0 %v319
      %v351 = vpop.f32.mrf.mxu0
      %v352 = vadd.f32 %v310, %v351
      %v353 = vpop.f32.mrf.mxu0
      %v354 = vadd.f32 %v310, %v353
      %355 = vmatmul.bf16.gmra.mxu0 %v322
      %v356 = vpop.f32.mrf.mxu0
      %v357 = vadd.f32 %v310, %v356
      %v358 = vpop.f32.mrf.mxu0
      %v359 = vadd.f32 %v310, %v358
      %360 = vmatmul.bf16.gmra.mxu0 %v325
      %v361 = vpop.f32.mrf.mxu0
      %v362 = vadd.f32 %v310, %v361
      %v363 = vpop.f32.mrf.mxu0
      %v364 = vadd.f32 %v310, %v363
      %365 = vmatmul.bf16.gmra.mxu0 %v328
      %v366 = vpop.f32.mrf.mxu0
      %v367 = vadd.f32 %v310, %v366
      %v368 = vpop.f32.mrf.mxu0
      %v369 = vadd.f32 %v310, %v368
      %370 = vmatmul.bf16.gmra.mxu0 %v331
      %v371 = vpop.f32.mrf.mxu0
      %v372 = vadd.f32 %v310, %v371
      %v373 = vpop.f32.mrf.mxu0
      %v374 = vadd.f32 %v310, %v373
      %375 = vmatmul.bf16.gmra.mxu0 %v334
      %v376 = vpop.f32.mrf.mxu0
      %v377 = vadd.f32 %v310, %v376
      %v378 = vpop.f32.mrf.mxu0
      %v379 = vadd.f32 %v310, %v378
      %380 = vmatmul.bf16.gmra.mxu0 %v337
      %v381 = vpop.f32.mrf.mxu0
      %v382 = vadd.f32 %v310, %v381
      %v383 = vpop.f32.mrf.mxu0
      %v384 = vadd.f32 %v310, %v383
      %385 = vmatmul.bf16.gmra.mxu0 %v340
      %v386 = vpop.f32.mrf.mxu0
      %v387 = vadd.f32 %v310, %v386
      %v388 = vpop.f32.mrf.mxu0
      %v389 = vadd.f32 %v310, %v388
      %390 = vdwg.mxu0
      %v391 = vld [vmem:[%s2] sm:$0xf]
      %v392 = vld [vmem:[%s2 + $0x4] sm:$0xf]
      %v393 = vld [vmem:[%s2 + $0x8] sm:$0xf]
      %v394 = vld [vmem:[%s2 + $0xc] sm:$0xf]
      %v395 = vpack.c.bf16 %v354, %v352
      %v396 = vpack.c.bf16 %v359, %v357
      %v397 = vpack.c.bf16 %v364, %v362
      %v398 = vpack.c.bf16 %v369, %v367
      %v399 = vpack.c.bf16 %v374, %v372
      %v400 = vpack.c.bf16 %v379, %v377
      %v401 = vpack.c.bf16 %v384, %v382
      %v402 = vpack.c.bf16 %v389, %v387
      %v403 = vperm.slane %v283, 1
      %v408 = vunpack.c.l.b16 %v391
      %v409 = vunpack.c.l.b16 %v392
      %v410 = vunpack.c.l.b16 %v393
      %v411 = vunpack.c.l.b16 %v394
      %v412 = vpack.c.b16 %v409, %v408
      %v413 = vpack.c.b16 %v411, %v410
      %vm416 = vcmask 261120
      %v418 = vsel %vm416, %v395, 0
      %v421 = vsel %vm416, %v396, 0
      %v424 = vsel %vm416, %v397, 0
      %v427 = vsel %vm416, %v398, 0
      %v430 = vsel %vm416, %v399, 0
      %v433 = vsel %vm416, %v400, 0
      %v436 = vsel %vm416, %v401, 0
      %v439 = vsel %vm416, %v402, 0
      %441 = vmatpush.bf16.msra.mxu0 0
      %442 = vmatpush.bf16.msra.mxu0 0
      %443 = vmatpush.bf16.msra.mxu0 0
      %444 = vmatpush.bf16.msra.mxu0 0
      %445 = vmatpush.bf16.msra.mxu0 0
      %446 = vmatpush.bf16.msra.mxu0 0
      %447 = vmatpush.bf16.msra.mxu0 %v413
      %448 = vmatpush.bf16.msra.mxu0 %v412
      %449 = vmatmul.bf16.gmra.mxu0 %v418
      %v450 = vpop.f32.mrf.mxu0
      %v451 = vadd.f32 %v403, %v450
      %v452 = vpop.f32.mrf.mxu0
      %v453 = vadd.f32 %v403, %v452
      %454 = vmatmul.bf16.gmra.mxu0 %v421
      %v455 = vpop.f32.mrf.mxu0
      %v456 = vadd.f32 %v403, %v455
      %v457 = vpop.f32.mrf.mxu0
      %v458 = vadd.f32 %v403, %v457
      %459 = vmatmul.bf16.gmra.mxu0 %v424
      %v460 = vpop.f32.mrf.mxu0
      %v461 = vadd.f32 %v403, %v460
      %v462 = vpop.f32.mrf.mxu0
      %v463 = vadd.f32 %v403, %v462
      %464 = vmatmul.bf16.gmra.mxu0 %v427
      %v465 = vpop.f32.mrf.mxu0
      %v466 = vadd.f32 %v403, %v465
      %v467 = vpop.f32.mrf.mxu0
      %v468 = vadd.f32 %v403, %v467
      %469 = vmatmul.bf16.gmra.mxu0 %v430
      %v470 = vpop.f32.mrf.mxu0
      %v471 = vadd.f32 %v403, %v470
      %v472 = vpop.f32.mrf.mxu0
      %v473 = vadd.f32 %v403, %v472
      %474 = vmatmul.bf16.gmra.mxu0 %v433
      %v475 = vpop.f32.mrf.mxu0
      %v476 = vadd.f32 %v403, %v475
      %v477 = vpop.f32.mrf.mxu0
      %v478 = vadd.f32 %v403, %v477
      %479 = vmatmul.bf16.gmra.mxu0 %v436
      %v480 = vpop.f32.mrf.mxu0
      %v481 = vadd.f32 %v403, %v480
      %v482 = vpop.f32.mrf.mxu0
      %v483 = vadd.f32 %v403, %v482
      %484 = vmatmul.bf16.gmra.mxu0 %v439
      %v485 = vpop.f32.mrf.mxu0
      %v486 = vadd.f32 %v403, %v485
      %v487 = vpop.f32.mrf.mxu0
      %v488 = vadd.f32 %v403, %v487
      %489 = vdwg.mxu0
      %v490 = vmax.f32 %v451, 0.0
      %v491 = vmax.f32 %v453, 0.0
      %v492 = vmax.f32 %v456, 0.0
      %v493 = vmax.f32 %v458, 0.0
      %v494 = vmax.f32 %v461, 0.0
      %v495 = vmax.f32 %v463, 0.0
      %v496 = vmax.f32 %v466, 0.0
      %v497 = vmax.f32 %v468, 0.0
      %v498 = vmax.f32 %v471, 0.0
      %v499 = vmax.f32 %v473, 0.0
      %v500 = vmax.f32 %v476, 0.0
      %v501 = vmax.f32 %v478, 0.0
      %v502 = vmax.f32 %v481, 0.0
      %v503 = vmax.f32 %v483, 0.0
      %v504 = vmax.f32 %v486, 0.0
      %v505 = vmax.f32 %v488, 0.0
      %v506 = vadd.f32 %v490, %v352
      %v507 = vadd.f32 %v491, %v354
      %v508 = vadd.f32 %v492, %v357
      %v509 = vadd.f32 %v493, %v359
      %v510 = vadd.f32 %v494, %v362
      %v511 = vadd.f32 %v495, %v364
      %v512 = vadd.f32 %v496, %v367
      %v513 = vadd.f32 %v497, %v369
      %v514 = vadd.f32 %v498, %v372
      %v515 = vadd.f32 %v499, %v374
      %v516 = vadd.f32 %v500, %v377
      %v517 = vadd.f32 %v501, %v379
      %v518 = vadd.f32 %v502, %v382
      %v519 = vadd.f32 %v503, %v384
      %v520 = vadd.f32 %v504, %v387
      %v521 = vadd.f32 %v505, %v389
      %v522 = vsel %vm416, %v506, 0.0
      %523 = vadd.xlane.f32.xlu0 %v522
      %v524 = vpop.xlane.xlu0 %523
      %v525 = vsel %vm416, %v507, 0.0
      %526 = vadd.xlane.f32.xlu0 %v525
      %v527 = vpop.xlane.xlu0 %526
      %v528 = vsel %vm416, %v508, 0.0
      %529 = vadd.xlane.f32.xlu0 %v528
      %v530 = vpop.xlane.xlu0 %529
      %v531 = vsel %vm416, %v509, 0.0
      %532 = vadd.xlane.f32.xlu0 %v531
      %v533 = vpop.xlane.xlu0 %532
      %v534 = vsel %vm416, %v510, 0.0
      %535 = vadd.xlane.f32.xlu0 %v534
      %v536 = vpop.xlane.xlu0 %535
      %v537 = vsel %vm416, %v511, 0.0
      %538 = vadd.xlane.f32.xlu0 %v537
      %v539 = vpop.xlane.xlu0 %538
      %v540 = vsel %vm416, %v512, 0.0
      %541 = vadd.xlane.f32.xlu0 %v540
      %v542 = vpop.xlane.xlu0 %541
      %v543 = vsel %vm416, %v513, 0.0
      %544 = vadd.xlane.f32.xlu0 %v543
      %v545 = vpop.xlane.xlu0 %544
      %v546 = vsel %vm416, %v514, 0.0
      %547 = vadd.xlane.f32.xlu0 %v546
      %v548 = vpop.xlane.xlu0 %547
      %v549 = vsel %vm416, %v515, 0.0
      %550 = vadd.xlane.f32.xlu0 %v549
      %v551 = vpop.xlane.xlu0 %550
      %v552 = vsel %vm416, %v516, 0.0
      %553 = vadd.xlane.f32.xlu0 %v552
      %v554 = vpop.xlane.xlu0 %553
      %v555 = vsel %vm416, %v517, 0.0
      %556 = vadd.xlane.f32.xlu0 %v555
      %v557 = vpop.xlane.xlu0 %556
      %v558 = vsel %vm416, %v518, 0.0
      %559 = vadd.xlane.f32.xlu0 %v558
      %v560 = vpop.xlane.xlu0 %559
      %v561 = vsel %vm416, %v519, 0.0
      %562 = vadd.xlane.f32.xlu0 %v561
      %v563 = vpop.xlane.xlu0 %562
      %v564 = vsel %vm416, %v520, 0.0
      %565 = vadd.xlane.f32.xlu0 %v564
      %v566 = vpop.xlane.xlu0 %565
      %v567 = vsel %vm416, %v521, 0.0
      %568 = vadd.xlane.f32.xlu0 %v567
      %v569 = vpop.xlane.xlu0 %568
      %v570 = vrcp.pop 32.0
      %v571 = vmul.f32 32.0, %v570
      %v572 = vsub.f32 1.0, %v571
      %v573 = vmul.f32 %v570, %v572
      %v574 = vadd.f32 %v570, %v573
      %vm575 = vweird.f32 %v570
      %v576 = vsel %vm575, %v570, %v574
      %v577 = vmul.f32 %v524, %v576
      %v578 = vmul.f32 %v527, %v576
      %v579 = vmul.f32 %v530, %v576
      %v580 = vmul.f32 %v533, %v576
      %v581 = vmul.f32 %v536, %v576
      %v582 = vmul.f32 %v539, %v576
      %v583 = vmul.f32 %v542, %v576
      %v584 = vmul.f32 %v545, %v576
      %v585 = vmul.f32 %v548, %v576
      %v586 = vmul.f32 %v551, %v576
      %v587 = vmul.f32 %v554, %v576
      %v588 = vmul.f32 %v557, %v576
      %v589 = vmul.f32 %v560, %v576
      %v590 = vmul.f32 %v563, %v576
      %v591 = vmul.f32 %v566, %v576
      %v592 = vmul.f32 %v569, %v576
      %v593 = vmul.f32 %v506, %v506
      %v594 = vmul.f32 %v507, %v507
      %v595 = vmul.f32 %v508, %v508
      %v596 = vmul.f32 %v509, %v509
      %v597 = vmul.f32 %v510, %v510
      %v598 = vmul.f32 %v511, %v511
      %v599 = vmul.f32 %v512, %v512
      %v600 = vmul.f32 %v513, %v513
      %v601 = vmul.f32 %v514, %v514
      %v602 = vmul.f32 %v515, %v515
      %v603 = vmul.f32 %v516, %v516
      %v604 = vmul.f32 %v517, %v517
      %v605 = vmul.f32 %v518, %v518
      %v606 = vmul.f32 %v519, %v519
      %v607 = vmul.f32 %v520, %v520
      %v608 = vmul.f32 %v521, %v521
      %v609 = vsel %vm416, %v593, 0.0
      %610 = vadd.xlane.f32.xlu0 %v609
      %v611 = vpop.xlane.xlu0 %610
      %v612 = vsel %vm416, %v594, 0.0
      %613 = vadd.xlane.f32.xlu0 %v612
      %v614 = vpop.xlane.xlu0 %613
      %v615 = vsel %vm416, %v595, 0.0
      %616 = vadd.xlane.f32.xlu0 %v615
      %v617 = vpop.xlane.xlu0 %616
      %v618 = vsel %vm416, %v596, 0.0
      %619 = vadd.xlane.f32.xlu0 %v618
      %v620 = vpop.xlane.xlu0 %619
      %v621 = vsel %vm416, %v597, 0.0
      %622 = vadd.xlane.f32.xlu0 %v621
      %v623 = vpop.xlane.xlu0 %622
      %v624 = vsel %vm416, %v598, 0.0
      %625 = vadd.xlane.f32.xlu0 %v624
      %v626 = vpop.xlane.xlu0 %625
      %v627 = vsel %vm416, %v599, 0.0
      %628 = vadd.xlane.f32.xlu0 %v627
      %v629 = vpop.xlane.xlu0 %628
      %v630 = vsel %vm416, %v600, 0.0
      %631 = vadd.xlane.f32.xlu0 %v630
      %v632 = vpop.xlane.xlu0 %631
      %v633 = vsel %vm416, %v601, 0.0
      %634 = vadd.xlane.f32.xlu0 %v633
      %v635 = vpop.xlane.xlu0 %634
      %v636 = vsel %vm416, %v602, 0.0
      %637 = vadd.xlane.f32.xlu0 %v636
      %v638 = vpop.xlane.xlu0 %637
      %v639 = vsel %vm416, %v603, 0.0
      %640 = vadd.xlane.f32.xlu0 %v639
      %v641 = vpop.xlane.xlu0 %640
      %v642 = vsel %vm416, %v604, 0.0
      %643 = vadd.xlane.f32.xlu0 %v642
      %v644 = vpop.xlane.xlu0 %643
      %v645 = vsel %vm416, %v605, 0.0
      %646 = vadd.xlane.f32.xlu0 %v645
      %v647 = vpop.xlane.xlu0 %646
      %v648 = vsel %vm416, %v606, 0.0
      %649 = vadd.xlane.f32.xlu0 %v648
      %v650 = vpop.xlane.xlu0 %649
      %v651 = vsel %vm416, %v607, 0.0
      %652 = vadd.xlane.f32.xlu0 %v651
      %v653 = vpop.xlane.xlu0 %652
      %v654 = vsel %vm416, %v608, 0.0
      %655 = vadd.xlane.f32.xlu0 %v654
      %v656 = vpop.xlane.xlu0 %655
      %v657 = vmul.f32 %v611, %v576
      %v658 = vmul.f32 %v614, %v576
      %v659 = vmul.f32 %v617, %v576
      %v660 = vmul.f32 %v620, %v576
      %v661 = vmul.f32 %v623, %v576
      %v662 = vmul.f32 %v626, %v576
      %v663 = vmul.f32 %v629, %v576
      %v664 = vmul.f32 %v632, %v576
      %v665 = vmul.f32 %v635, %v576
      %v666 = vmul.f32 %v638, %v576
      %v667 = vmul.f32 %v641, %v576
      %v668 = vmul.f32 %v644, %v576
      %v669 = vmul.f32 %v647, %v576
      %v670 = vmul.f32 %v650, %v576
      %v671 = vmul.f32 %v653, %v576
      %v672 = vmul.f32 %v656, %v576
      %v673 = vmul.f32 %v577, %v577
      %v674 = vmul.f32 %v578, %v578
      %v675 = vmul.f32 %v579, %v579
      %v676 = vmul.f32 %v580, %v580
      %v677 = vmul.f32 %v581, %v581
      %v678 = vmul.f32 %v582, %v582
      %v679 = vmul.f32 %v583, %v583
      %v680 = vmul.f32 %v584, %v584
      %v681 = vmul.f32 %v585, %v585
      %v682 = vmul.f32 %v586, %v586
      %v683 = vmul.f32 %v587, %v587
      %v684 = vmul.f32 %v588, %v588
      %v685 = vmul.f32 %v589, %v589
      %v686 = vmul.f32 %v590, %v590
      %v687 = vmul.f32 %v591, %v591
      %v688 = vmul.f32 %v592, %v592
      %v689 = vsub.f32 %v657, %v673
      %v690 = vsub.f32 %v658, %v674
      %v691 = vsub.f32 %v659, %v675
      %v692 = vsub.f32 %v660, %v676
      %v693 = vsub.f32 %v661, %v677
      %v694 = vsub.f32 %v662, %v678
      %v695 = vsub.f32 %v663, %v679
      %v696 = vsub.f32 %v664, %v680
      %v697 = vsub.f32 %v665, %v681
      %v698 = vsub.f32 %v666, %v682
      %v699 = vsub.f32 %v667, %v683
      %v700 = vsub.f32 %v668, %v684
      %v701 = vsub.f32 %v669, %v685
      %v702 = vsub.f32 %v670, %v686
      %v703 = vsub.f32 %v671, %v687
      %v704 = vsub.f32 %v672, %v688
      %v705 = vmax.f32 %v689, 0.0
      %v706 = vmax.f32 %v690, 0.0
      %v707 = vmax.f32 %v691, 0.0
      %v708 = vmax.f32 %v692, 0.0
      %v709 = vmax.f32 %v693, 0.0
      %v710 = vmax.f32 %v694, 0.0
      %v711 = vmax.f32 %v695, 0.0
      %v712 = vmax.f32 %v696, 0.0
      %v713 = vmax.f32 %v697, 0.0
      %v714 = vmax.f32 %v698, 0.0
      %v715 = vmax.f32 %v699, 0.0
      %v716 = vmax.f32 %v700, 0.0
      %v717 = vmax.f32 %v701, 0.0
      %v718 = vmax.f32 %v702, 0.0
      %v719 = vmax.f32 %v703, 0.0
      %v720 = vmax.f32 %v704, 0.0
      %v721 = vsub.f32 %v506, %v577
      %v722 = vsub.f32 %v507, %v578
      %v723 = vsub.f32 %v508, %v579
      %v724 = vsub.f32 %v509, %v580
      %v725 = vsub.f32 %v510, %v581
      %v726 = vsub.f32 %v511, %v582
      %v727 = vsub.f32 %v512, %v583
      %v728 = vsub.f32 %v513, %v584
      %v729 = vsub.f32 %v514, %v585
      %v730 = vsub.f32 %v515, %v586
      %v731 = vsub.f32 %v516, %v587
      %v732 = vsub.f32 %v517, %v588
      %v733 = vsub.f32 %v518, %v589
      %v734 = vsub.f32 %v519, %v590
      %v735 = vsub.f32 %v520, %v591
      %v736 = vsub.f32 %v521, %v592
      %v737 = vadd.f32 %v705, 1e-12
      %v738 = vadd.f32 %v706, 1e-12
      %v739 = vadd.f32 %v707, 1e-12
      %v740 = vadd.f32 %v708, 1e-12
      %v741 = vadd.f32 %v709, 1e-12
      %v742 = vadd.f32 %v710, 1e-12
      %v743 = vadd.f32 %v711, 1e-12
      %v744 = vadd.f32 %v712, 1e-12
      %v745 = vadd.f32 %v713, 1e-12
      %v746 = vadd.f32 %v714, 1e-12
      %v747 = vadd.f32 %v715, 1e-12
      %v748 = vadd.f32 %v716, 1e-12
      %v749 = vadd.f32 %v717, 1e-12
      %v750 = vadd.f32 %v718, 1e-12
      %v751 = vadd.f32 %v719, 1e-12
      %v752 = vadd.f32 %v720, 1e-12
      %v753 = vrsqrt.pop %v737
      %v754 = vmul.f32 %v753, %v737
      %v755 = vmul.f32 %v754, %v753
      %v756 = vmul.f32 0.5, %v755
      %v757 = vsub.f32 1.5, %v756
      %v758 = vmul.f32 %v753, %v757
      %vm759 = vweird.f32 %v737
      %vm760 = vweird.f32 %v753
      %vm761 = vmor %vm759, %vm760
      %v762 = vsel %vm761, %v753, %v758
      %v763 = vrsqrt.pop %v738
      %v764 = vmul.f32 %v763, %v738
      %v765 = vmul.f32 %v764, %v763
      %v766 = vmul.f32 0.5, %v765
      %v767 = vsub.f32 1.5, %v766
      %v768 = vmul.f32 %v763, %v767
      %vm769 = vweird.f32 %v738
      %vm770 = vweird.f32 %v763
      %vm771 = vmor %vm769, %vm770
      %v772 = vsel %vm771, %v763, %v768
      %v773 = vrsqrt.pop %v739
      %v774 = vmul.f32 %v773, %v739
      %v775 = vmul.f32 %v774, %v773
      %v776 = vmul.f32 0.5, %v775
      %v777 = vsub.f32 1.5, %v776
      %v778 = vmul.f32 %v773, %v777
      %vm779 = vweird.f32 %v739
      %vm780 = vweird.f32 %v773
      %vm781 = vmor %vm779, %vm780
      %v782 = vsel %vm781, %v773, %v778
      %v783 = vrsqrt.pop %v740
      %v784 = vmul.f32 %v783, %v740
      %v785 = vmul.f32 %v784, %v783
      %v786 = vmul.f32 0.5, %v785
      %v787 = vsub.f32 1.5, %v786
      %v788 = vmul.f32 %v783, %v787
      %vm789 = vweird.f32 %v740
      %vm790 = vweird.f32 %v783
      %vm791 = vmor %vm789, %vm790
      %v792 = vsel %vm791, %v783, %v788
      %v793 = vrsqrt.pop %v741
      %v794 = vmul.f32 %v793, %v741
      %v795 = vmul.f32 %v794, %v793
      %v796 = vmul.f32 0.5, %v795
      %v797 = vsub.f32 1.5, %v796
      %v798 = vmul.f32 %v793, %v797
      %vm799 = vweird.f32 %v741
      %vm800 = vweird.f32 %v793
      %vm801 = vmor %vm799, %vm800
      %v802 = vsel %vm801, %v793, %v798
      %v803 = vrsqrt.pop %v742
      %v804 = vmul.f32 %v803, %v742
      %v805 = vmul.f32 %v804, %v803
      %v806 = vmul.f32 0.5, %v805
      %v807 = vsub.f32 1.5, %v806
      %v808 = vmul.f32 %v803, %v807
      %vm809 = vweird.f32 %v742
      %vm810 = vweird.f32 %v803
      %vm811 = vmor %vm809, %vm810
      %v812 = vsel %vm811, %v803, %v808
      %v813 = vrsqrt.pop %v743
      %v814 = vmul.f32 %v813, %v743
      %v815 = vmul.f32 %v814, %v813
      %v816 = vmul.f32 0.5, %v815
      %v817 = vsub.f32 1.5, %v816
      %v818 = vmul.f32 %v813, %v817
      %vm819 = vweird.f32 %v743
      %vm820 = vweird.f32 %v813
      %vm821 = vmor %vm819, %vm820
      %v822 = vsel %vm821, %v813, %v818
      %v823 = vrsqrt.pop %v744
      %v824 = vmul.f32 %v823, %v744
      %v825 = vmul.f32 %v824, %v823
      %v826 = vmul.f32 0.5, %v825
      %v827 = vsub.f32 1.5, %v826
      %v828 = vmul.f32 %v823, %v827
      %vm829 = vweird.f32 %v744
      %vm830 = vweird.f32 %v823
      %vm831 = vmor %vm829, %vm830
      %v832 = vsel %vm831, %v823, %v828
      %v833 = vrsqrt.pop %v745
      %v834 = vmul.f32 %v833, %v745
      %v835 = vmul.f32 %v834, %v833
      %v836 = vmul.f32 0.5, %v835
      %v837 = vsub.f32 1.5, %v836
      %v838 = vmul.f32 %v833, %v837
      %vm839 = vweird.f32 %v745
      %vm840 = vweird.f32 %v833
      %vm841 = vmor %vm839, %vm840
      %v842 = vsel %vm841, %v833, %v838
      %v843 = vrsqrt.pop %v746
      %v844 = vmul.f32 %v843, %v746
      %v845 = vmul.f32 %v844, %v843
      %v846 = vmul.f32 0.5, %v845
      %v847 = vsub.f32 1.5, %v846
      %v848 = vmul.f32 %v843, %v847
      %vm849 = vweird.f32 %v746
      %vm850 = vweird.f32 %v843
      %vm851 = vmor %vm849, %vm850
      %v852 = vsel %vm851, %v843, %v848
      %v853 = vrsqrt.pop %v747
      %v854 = vmul.f32 %v853, %v747
      %v855 = vmul.f32 %v854, %v853
      %v856 = vmul.f32 0.5, %v855
      %v857 = vsub.f32 1.5, %v856
      %v858 = vmul.f32 %v853, %v857
      %vm859 = vweird.f32 %v747
      %vm860 = vweird.f32 %v853
      %vm861 = vmor %vm859, %vm860
      %v862 = vsel %vm861, %v853, %v858
      %v863 = vrsqrt.pop %v748
      %v864 = vmul.f32 %v863, %v748
      %v865 = vmul.f32 %v864, %v863
      %v866 = vmul.f32 0.5, %v865
      %v867 = vsub.f32 1.5, %v866
      %v868 = vmul.f32 %v863, %v867
      %vm869 = vweird.f32 %v748
      %vm870 = vweird.f32 %v863
      %vm871 = vmor %vm869, %vm870
      %v872 = vsel %vm871, %v863, %v868
      %v873 = vrsqrt.pop %v749
      %v874 = vmul.f32 %v873, %v749
      %v875 = vmul.f32 %v874, %v873
      %v876 = vmul.f32 0.5, %v875
      %v877 = vsub.f32 1.5, %v876
      %v878 = vmul.f32 %v873, %v877
      %vm879 = vweird.f32 %v749
      %vm880 = vweird.f32 %v873
      %vm881 = vmor %vm879, %vm880
      %v882 = vsel %vm881, %v873, %v878
      %v883 = vrsqrt.pop %v750
      %v884 = vmul.f32 %v883, %v750
      %v885 = vmul.f32 %v884, %v883
      %v886 = vmul.f32 0.5, %v885
      %v887 = vsub.f32 1.5, %v886
      %v888 = vmul.f32 %v883, %v887
      %vm889 = vweird.f32 %v750
      %vm890 = vweird.f32 %v883
      %vm891 = vmor %vm889, %vm890
      %v892 = vsel %vm891, %v883, %v888
      %v893 = vrsqrt.pop %v751
      %v894 = vmul.f32 %v893, %v751
      %v895 = vmul.f32 %v894, %v893
      %v896 = vmul.f32 0.5, %v895
      %v897 = vsub.f32 1.5, %v896
      %v898 = vmul.f32 %v893, %v897
      %vm899 = vweird.f32 %v751
      %vm900 = vweird.f32 %v893
      %vm901 = vmor %vm899, %vm900
      %v902 = vsel %vm901, %v893, %v898
      %v903 = vrsqrt.pop %v752
      %v904 = vmul.f32 %v903, %v752
      %v905 = vmul.f32 %v904, %v903
      %v906 = vmul.f32 0.5, %v905
      %v907 = vsub.f32 1.5, %v906
      %v908 = vmul.f32 %v903, %v907
      %vm909 = vweird.f32 %v752
      %vm910 = vweird.f32 %v903
      %vm911 = vmor %vm909, %vm910
      %v912 = vsel %vm911, %v903, %v908
      %v913 = vmul.f32 %v721, %v762
      %v914 = vmul.f32 %v722, %v772
      %v915 = vmul.f32 %v723, %v782
      %v916 = vmul.f32 %v724, %v792
      %v917 = vmul.f32 %v725, %v802
      %v918 = vmul.f32 %v726, %v812
      %v919 = vmul.f32 %v727, %v822
      %v920 = vmul.f32 %v728, %v832
      %v921 = vmul.f32 %v729, %v842
      %v922 = vmul.f32 %v730, %v852
      %v923 = vmul.f32 %v731, %v862
      %v924 = vmul.f32 %v732, %v872
      %v925 = vmul.f32 %v733, %v882
      %v926 = vmul.f32 %v734, %v892
      %v927 = vmul.f32 %v735, %v902
      %v928 = vmul.f32 %v736, %v912
      %v929 = vperm.slane %v283, 2
      %v930 = vmul.f32 %v913, %v929
      %v931 = vmul.f32 %v914, %v929
      %v932 = vmul.f32 %v915, %v929
      %v933 = vmul.f32 %v916, %v929
      %v934 = vmul.f32 %v917, %v929
      %v935 = vmul.f32 %v918, %v929
      %v936 = vmul.f32 %v919, %v929
      %v937 = vmul.f32 %v920, %v929
      %v938 = vmul.f32 %v921, %v929
      %v939 = vmul.f32 %v922, %v929
      %v940 = vmul.f32 %v923, %v929
      %v941 = vmul.f32 %v924, %v929
      %v942 = vmul.f32 %v925, %v929
      %v943 = vmul.f32 %v926, %v929
      %v944 = vmul.f32 %v927, %v929
      %v945 = vmul.f32 %v928, %v929
      %v946 = vperm.slane %v283, 3
      %v947 = vadd.f32 %v930, %v946
      %v948 = vadd.f32 %v931, %v946
      %v949 = vadd.f32 %v932, %v946
      %v950 = vadd.f32 %v933, %v946
      %v951 = vadd.f32 %v934, %v946
      %v952 = vadd.f32 %v935, %v946
      %v953 = vadd.f32 %v936, %v946
      %v954 = vadd.f32 %v937, %v946
      %v955 = vadd.f32 %v938, %v946
      %v956 = vadd.f32 %v939, %v946
      %v957 = vadd.f32 %v940, %v946
      %v958 = vadd.f32 %v941, %v946
      %v959 = vadd.f32 %v942, %v946
      %v960 = vadd.f32 %v943, %v946
      %v961 = vadd.f32 %v944, %v946
      %v962 = vadd.f32 %v945, %v946
      %v963 = vld [vmem:[%s3] sm:$0xf]
      %v964 = vld [vmem:[%s3 + $0x4] sm:$0xf]
      %v965 = vld [vmem:[%s3 + $0x8] sm:$0xf]
      %v966 = vld [vmem:[%s3 + $0xc] sm:$0xf]
      %v967 = vpack.c.bf16 %v948, %v947
      %v968 = vpack.c.bf16 %v950, %v949
      %v969 = vpack.c.bf16 %v952, %v951
      %v970 = vpack.c.bf16 %v954, %v953
      %v971 = vpack.c.bf16 %v956, %v955
      %v972 = vpack.c.bf16 %v958, %v957
      %v973 = vpack.c.bf16 %v960, %v959
      %v974 = vpack.c.bf16 %v962, %v961
      %v975 = vperm.slane %v283, 4
      %v980 = vunpack.c.l.b16 %v963
      %v981 = vunpack.c.l.b16 %v964
      %v982 = vunpack.c.l.b16 %v965
      %v983 = vunpack.c.l.b16 %v966
      %v984 = vpack.c.b16 %v981, %v980
      %v985 = vpack.c.b16 %v983, %v982
      %v989 = vsel %vm416, %v967, 0
      %v992 = vsel %vm416, %v968, 0
      %v995 = vsel %vm416, %v969, 0
      %v998 = vsel %vm416, %v970, 0
      %v1001 = vsel %vm416, %v971, 0
      %v1004 = vsel %vm416, %v972, 0
      %v1007 = vsel %vm416, %v973, 0
      %v1010 = vsel %vm416, %v974, 0
      %1012 = vmatpush.bf16.msra.mxu0 0
      %1013 = vmatpush.bf16.msra.mxu0 0
      %1014 = vmatpush.bf16.msra.mxu0 0
      %1015 = vmatpush.bf16.msra.mxu0 0
      %1016 = vmatpush.bf16.msra.mxu0 0
      %1017 = vmatpush.bf16.msra.mxu0 0
      %1018 = vmatpush.bf16.msra.mxu0 %v985
      %1019 = vmatpush.bf16.msra.mxu0 %v984
      %1020 = vmatmul.bf16.gmra.mxu0 %v989
      %v1021 = vpop.f32.mrf.mxu0
      %v1022 = vadd.f32 %v975, %v1021
      %v1023 = vpop.f32.mrf.mxu0
      %v1024 = vadd.f32 %v975, %v1023
      %1025 = vmatmul.bf16.gmra.mxu0 %v992
      %v1026 = vpop.f32.mrf.mxu0
      %v1027 = vadd.f32 %v975, %v1026
      %v1028 = vpop.f32.mrf.mxu0
      %v1029 = vadd.f32 %v975, %v1028
      %1030 = vmatmul.bf16.gmra.mxu0 %v995
      %v1031 = vpop.f32.mrf.mxu0
      %v1032 = vadd.f32 %v975, %v1031
      %v1033 = vpop.f32.mrf.mxu0
      %v1034 = vadd.f32 %v975, %v1033
      %1035 = vmatmul.bf16.gmra.mxu0 %v998
      %v1036 = vpop.f32.mrf.mxu0
      %v1037 = vadd.f32 %v975, %v1036
      %v1038 = vpop.f32.mrf.mxu0
      %v1039 = vadd.f32 %v975, %v1038
      %1040 = vmatmul.bf16.gmra.mxu0 %v1001
      %v1041 = vpop.f32.mrf.mxu0
      %v1042 = vadd.f32 %v975, %v1041
      %v1043 = vpop.f32.mrf.mxu0
      %v1044 = vadd.f32 %v975, %v1043
      %1045 = vmatmul.bf16.gmra.mxu0 %v1004
      %v1046 = vpop.f32.mrf.mxu0
      %v1047 = vadd.f32 %v975, %v1046
      %v1048 = vpop.f32.mrf.mxu0
      %v1049 = vadd.f32 %v975, %v1048
      %1050 = vmatmul.bf16.gmra.mxu0 %v1007
      %v1051 = vpop.f32.mrf.mxu0
      %v1052 = vadd.f32 %v975, %v1051
      %v1053 = vpop.f32.mrf.mxu0
      %v1054 = vadd.f32 %v975, %v1053
      %1055 = vmatmul.bf16.gmra.mxu0 %v1010
      %v1056 = vpop.f32.mrf.mxu0
      %v1057 = vadd.f32 %v975, %v1056
      %v1058 = vpop.f32.mrf.mxu0
      %v1059 = vadd.f32 %v975, %v1058
      %1060 = vdwg.mxu0
      %v1061 = vmax.f32 %v1022, 0.0
      %v1062 = vmax.f32 %v1024, 0.0
      %v1063 = vmax.f32 %v1027, 0.0
      %v1064 = vmax.f32 %v1029, 0.0
      %v1065 = vmax.f32 %v1032, 0.0
      %v1066 = vmax.f32 %v1034, 0.0
      %v1067 = vmax.f32 %v1037, 0.0
      %v1068 = vmax.f32 %v1039, 0.0
      %v1069 = vmax.f32 %v1042, 0.0
      %v1070 = vmax.f32 %v1044, 0.0
      %v1071 = vmax.f32 %v1047, 0.0
      %v1072 = vmax.f32 %v1049, 0.0
      %v1073 = vmax.f32 %v1052, 0.0
      %v1074 = vmax.f32 %v1054, 0.0
      %v1075 = vmax.f32 %v1057, 0.0
      %v1076 = vmax.f32 %v1059, 0.0
      %v1077 = vadd.f32 %v1061, %v947
      %v1078 = vadd.f32 %v1062, %v948
      %v1079 = vadd.f32 %v1063, %v949
      %v1080 = vadd.f32 %v1064, %v950
      %v1081 = vadd.f32 %v1065, %v951
      %v1082 = vadd.f32 %v1066, %v952
      %v1083 = vadd.f32 %v1067, %v953
      %v1084 = vadd.f32 %v1068, %v954
      %v1085 = vadd.f32 %v1069, %v955
      %v1086 = vadd.f32 %v1070, %v956
      %v1087 = vadd.f32 %v1071, %v957
      %v1088 = vadd.f32 %v1072, %v958
      %v1089 = vadd.f32 %v1073, %v959
      %v1090 = vadd.f32 %v1074, %v960
      %v1091 = vadd.f32 %v1075, %v961
      %v1092 = vadd.f32 %v1076, %v962
      %v1093 = vsel %vm416, %v1077, 0.0
      %1094 = vadd.xlane.f32.xlu0 %v1093
      %v1095 = vpop.xlane.xlu0 %1094
      %v1096 = vsel %vm416, %v1078, 0.0
      %1097 = vadd.xlane.f32.xlu0 %v1096
      %v1098 = vpop.xlane.xlu0 %1097
      %v1099 = vsel %vm416, %v1079, 0.0
      %1100 = vadd.xlane.f32.xlu0 %v1099
      %v1101 = vpop.xlane.xlu0 %1100
      %v1102 = vsel %vm416, %v1080, 0.0
      %1103 = vadd.xlane.f32.xlu0 %v1102
      %v1104 = vpop.xlane.xlu0 %1103
      %v1105 = vsel %vm416, %v1081, 0.0
      %1106 = vadd.xlane.f32.xlu0 %v1105
      %v1107 = vpop.xlane.xlu0 %1106
      %v1108 = vsel %vm416, %v1082, 0.0
      %1109 = vadd.xlane.f32.xlu0 %v1108
      %v1110 = vpop.xlane.xlu0 %1109
      %v1111 = vsel %vm416, %v1083, 0.0
      %1112 = vadd.xlane.f32.xlu0 %v1111
      %v1113 = vpop.xlane.xlu0 %1112
      %v1114 = vsel %vm416, %v1084, 0.0
      %1115 = vadd.xlane.f32.xlu0 %v1114
      %v1116 = vpop.xlane.xlu0 %1115
      %v1117 = vsel %vm416, %v1085, 0.0
      %1118 = vadd.xlane.f32.xlu0 %v1117
      %v1119 = vpop.xlane.xlu0 %1118
      %v1120 = vsel %vm416, %v1086, 0.0
      %1121 = vadd.xlane.f32.xlu0 %v1120
      %v1122 = vpop.xlane.xlu0 %1121
      %v1123 = vsel %vm416, %v1087, 0.0
      %1124 = vadd.xlane.f32.xlu0 %v1123
      %v1125 = vpop.xlane.xlu0 %1124
      %v1126 = vsel %vm416, %v1088, 0.0
      %1127 = vadd.xlane.f32.xlu0 %v1126
      %v1128 = vpop.xlane.xlu0 %1127
      %v1129 = vsel %vm416, %v1089, 0.0
      %1130 = vadd.xlane.f32.xlu0 %v1129
      %v1131 = vpop.xlane.xlu0 %1130
      %v1132 = vsel %vm416, %v1090, 0.0
      %1133 = vadd.xlane.f32.xlu0 %v1132
      %v1134 = vpop.xlane.xlu0 %1133
      %v1135 = vsel %vm416, %v1091, 0.0
      %1136 = vadd.xlane.f32.xlu0 %v1135
      %v1137 = vpop.xlane.xlu0 %1136
      %v1138 = vsel %vm416, %v1092, 0.0
      %1139 = vadd.xlane.f32.xlu0 %v1138
      %v1140 = vpop.xlane.xlu0 %1139
      %v1141 = vmul.f32 %v1095, %v576
      %v1142 = vmul.f32 %v1098, %v576
      %v1143 = vmul.f32 %v1101, %v576
      %v1144 = vmul.f32 %v1104, %v576
      %v1145 = vmul.f32 %v1107, %v576
      %v1146 = vmul.f32 %v1110, %v576
      %v1147 = vmul.f32 %v1113, %v576
      %v1148 = vmul.f32 %v1116, %v576
      %v1149 = vmul.f32 %v1119, %v576
      %v1150 = vmul.f32 %v1122, %v576
      %v1151 = vmul.f32 %v1125, %v576
      %v1152 = vmul.f32 %v1128, %v576
      %v1153 = vmul.f32 %v1131, %v576
      %v1154 = vmul.f32 %v1134, %v576
      %v1155 = vmul.f32 %v1137, %v576
      %v1156 = vmul.f32 %v1140, %v576
      %v1157 = vmul.f32 %v1077, %v1077
      %v1158 = vmul.f32 %v1078, %v1078
      %v1159 = vmul.f32 %v1079, %v1079
      %v1160 = vmul.f32 %v1080, %v1080
      %v1161 = vmul.f32 %v1081, %v1081
      %v1162 = vmul.f32 %v1082, %v1082
      %v1163 = vmul.f32 %v1083, %v1083
      %v1164 = vmul.f32 %v1084, %v1084
      %v1165 = vmul.f32 %v1085, %v1085
      %v1166 = vmul.f32 %v1086, %v1086
      %v1167 = vmul.f32 %v1087, %v1087
      %v1168 = vmul.f32 %v1088, %v1088
      %v1169 = vmul.f32 %v1089, %v1089
      %v1170 = vmul.f32 %v1090, %v1090
      %v1171 = vmul.f32 %v1091, %v1091
      %v1172 = vmul.f32 %v1092, %v1092
      %v1173 = vsel %vm416, %v1157, 0.0
      %1174 = vadd.xlane.f32.xlu0 %v1173
      %v1175 = vpop.xlane.xlu0 %1174
      %v1176 = vsel %vm416, %v1158, 0.0
      %1177 = vadd.xlane.f32.xlu0 %v1176
      %v1178 = vpop.xlane.xlu0 %1177
      %v1179 = vsel %vm416, %v1159, 0.0
      %1180 = vadd.xlane.f32.xlu0 %v1179
      %v1181 = vpop.xlane.xlu0 %1180
      %v1182 = vsel %vm416, %v1160, 0.0
      %1183 = vadd.xlane.f32.xlu0 %v1182
      %v1184 = vpop.xlane.xlu0 %1183
      %v1185 = vsel %vm416, %v1161, 0.0
      %1186 = vadd.xlane.f32.xlu0 %v1185
      %v1187 = vpop.xlane.xlu0 %1186
      %v1188 = vsel %vm416, %v1162, 0.0
      %1189 = vadd.xlane.f32.xlu0 %v1188
      %v1190 = vpop.xlane.xlu0 %1189
      %v1191 = vsel %vm416, %v1163, 0.0
      %1192 = vadd.xlane.f32.xlu0 %v1191
      %v1193 = vpop.xlane.xlu0 %1192
      %v1194 = vsel %vm416, %v1164, 0.0
      %1195 = vadd.xlane.f32.xlu0 %v1194
      %v1196 = vpop.xlane.xlu0 %1195
      %v1197 = vsel %vm416, %v1165, 0.0
      %1198 = vadd.xlane.f32.xlu0 %v1197
      %v1199 = vpop.xlane.xlu0 %1198
      %v1200 = vsel %vm416, %v1166, 0.0
      %1201 = vadd.xlane.f32.xlu0 %v1200
      %v1202 = vpop.xlane.xlu0 %1201
      %v1203 = vsel %vm416, %v1167, 0.0
      %1204 = vadd.xlane.f32.xlu0 %v1203
      %v1205 = vpop.xlane.xlu0 %1204
      %v1206 = vsel %vm416, %v1168, 0.0
      %1207 = vadd.xlane.f32.xlu0 %v1206
      %v1208 = vpop.xlane.xlu0 %1207
      %v1209 = vsel %vm416, %v1169, 0.0
      %1210 = vadd.xlane.f32.xlu0 %v1209
      %v1211 = vpop.xlane.xlu0 %1210
      %v1212 = vsel %vm416, %v1170, 0.0
      %1213 = vadd.xlane.f32.xlu0 %v1212
      %v1214 = vpop.xlane.xlu0 %1213
      %v1215 = vsel %vm416, %v1171, 0.0
      %1216 = vadd.xlane.f32.xlu0 %v1215
      %v1217 = vpop.xlane.xlu0 %1216
      %v1218 = vsel %vm416, %v1172, 0.0
      %1219 = vadd.xlane.f32.xlu0 %v1218
      %v1220 = vpop.xlane.xlu0 %1219
      %v1221 = vmul.f32 %v1175, %v576
      %v1222 = vmul.f32 %v1178, %v576
      %v1223 = vmul.f32 %v1181, %v576
      %v1224 = vmul.f32 %v1184, %v576
      %v1225 = vmul.f32 %v1187, %v576
      %v1226 = vmul.f32 %v1190, %v576
      %v1227 = vmul.f32 %v1193, %v576
      %v1228 = vmul.f32 %v1196, %v576
      %v1229 = vmul.f32 %v1199, %v576
      %v1230 = vmul.f32 %v1202, %v576
      %v1231 = vmul.f32 %v1205, %v576
      %v1232 = vmul.f32 %v1208, %v576
      %v1233 = vmul.f32 %v1211, %v576
      %v1234 = vmul.f32 %v1214, %v576
      %v1235 = vmul.f32 %v1217, %v576
      %v1236 = vmul.f32 %v1220, %v576
      %v1237 = vmul.f32 %v1141, %v1141
      %v1238 = vmul.f32 %v1142, %v1142
      %v1239 = vmul.f32 %v1143, %v1143
      %v1240 = vmul.f32 %v1144, %v1144
      %v1241 = vmul.f32 %v1145, %v1145
      %v1242 = vmul.f32 %v1146, %v1146
      %v1243 = vmul.f32 %v1147, %v1147
      %v1244 = vmul.f32 %v1148, %v1148
      %v1245 = vmul.f32 %v1149, %v1149
      %v1246 = vmul.f32 %v1150, %v1150
      %v1247 = vmul.f32 %v1151, %v1151
      %v1248 = vmul.f32 %v1152, %v1152
      %v1249 = vmul.f32 %v1153, %v1153
      %v1250 = vmul.f32 %v1154, %v1154
      %v1251 = vmul.f32 %v1155, %v1155
      %v1252 = vmul.f32 %v1156, %v1156
      %v1253 = vsub.f32 %v1221, %v1237
      %v1254 = vsub.f32 %v1222, %v1238
      %v1255 = vsub.f32 %v1223, %v1239
      %v1256 = vsub.f32 %v1224, %v1240
      %v1257 = vsub.f32 %v1225, %v1241
      %v1258 = vsub.f32 %v1226, %v1242
      %v1259 = vsub.f32 %v1227, %v1243
      %v1260 = vsub.f32 %v1228, %v1244
      %v1261 = vsub.f32 %v1229, %v1245
      %v1262 = vsub.f32 %v1230, %v1246
      %v1263 = vsub.f32 %v1231, %v1247
      %v1264 = vsub.f32 %v1232, %v1248
      %v1265 = vsub.f32 %v1233, %v1249
      %v1266 = vsub.f32 %v1234, %v1250
      %v1267 = vsub.f32 %v1235, %v1251
      %v1268 = vsub.f32 %v1236, %v1252
      %v1269 = vmax.f32 %v1253, 0.0
      %v1270 = vmax.f32 %v1254, 0.0
      %v1271 = vmax.f32 %v1255, 0.0
      %v1272 = vmax.f32 %v1256, 0.0
      %v1273 = vmax.f32 %v1257, 0.0
      %v1274 = vmax.f32 %v1258, 0.0
      %v1275 = vmax.f32 %v1259, 0.0
      %v1276 = vmax.f32 %v1260, 0.0
      %v1277 = vmax.f32 %v1261, 0.0
      %v1278 = vmax.f32 %v1262, 0.0
      %v1279 = vmax.f32 %v1263, 0.0
      %v1280 = vmax.f32 %v1264, 0.0
      %v1281 = vmax.f32 %v1265, 0.0
      %v1282 = vmax.f32 %v1266, 0.0
      %v1283 = vmax.f32 %v1267, 0.0
      %v1284 = vmax.f32 %v1268, 0.0
      %v1285 = vsub.f32 %v1077, %v1141
      %v1286 = vsub.f32 %v1078, %v1142
      %v1287 = vsub.f32 %v1079, %v1143
      %v1288 = vsub.f32 %v1080, %v1144
      %v1289 = vsub.f32 %v1081, %v1145
      %v1290 = vsub.f32 %v1082, %v1146
      %v1291 = vsub.f32 %v1083, %v1147
      %v1292 = vsub.f32 %v1084, %v1148
      %v1293 = vsub.f32 %v1085, %v1149
      %v1294 = vsub.f32 %v1086, %v1150
      %v1295 = vsub.f32 %v1087, %v1151
      %v1296 = vsub.f32 %v1088, %v1152
      %v1297 = vsub.f32 %v1089, %v1153
      %v1298 = vsub.f32 %v1090, %v1154
      %v1299 = vsub.f32 %v1091, %v1155
      %v1300 = vsub.f32 %v1092, %v1156
      %v1301 = vadd.f32 %v1269, 1e-12
      %v1302 = vadd.f32 %v1270, 1e-12
      %v1303 = vadd.f32 %v1271, 1e-12
      %v1304 = vadd.f32 %v1272, 1e-12
      %v1305 = vadd.f32 %v1273, 1e-12
      %v1306 = vadd.f32 %v1274, 1e-12
      %v1307 = vadd.f32 %v1275, 1e-12
      %v1308 = vadd.f32 %v1276, 1e-12
      %v1309 = vadd.f32 %v1277, 1e-12
      %v1310 = vadd.f32 %v1278, 1e-12
      %v1311 = vadd.f32 %v1279, 1e-12
      %v1312 = vadd.f32 %v1280, 1e-12
      %v1313 = vadd.f32 %v1281, 1e-12
      %v1314 = vadd.f32 %v1282, 1e-12
      %v1315 = vadd.f32 %v1283, 1e-12
      %v1316 = vadd.f32 %v1284, 1e-12
      %v1317 = vrsqrt.pop %v1301
      %v1318 = vmul.f32 %v1317, %v1301
      %v1319 = vmul.f32 %v1318, %v1317
      %v1320 = vmul.f32 0.5, %v1319
      %v1321 = vsub.f32 1.5, %v1320
      %v1322 = vmul.f32 %v1317, %v1321
      %vm1323 = vweird.f32 %v1301
      %vm1324 = vweird.f32 %v1317
      %vm1325 = vmor %vm1323, %vm1324
      %v1326 = vsel %vm1325, %v1317, %v1322
      %v1327 = vrsqrt.pop %v1302
      %v1328 = vmul.f32 %v1327, %v1302
      %v1329 = vmul.f32 %v1328, %v1327
      %v1330 = vmul.f32 0.5, %v1329
      %v1331 = vsub.f32 1.5, %v1330
      %v1332 = vmul.f32 %v1327, %v1331
      %vm1333 = vweird.f32 %v1302
      %vm1334 = vweird.f32 %v1327
      %vm1335 = vmor %vm1333, %vm1334
      %v1336 = vsel %vm1335, %v1327, %v1332
      %v1337 = vrsqrt.pop %v1303
      %v1338 = vmul.f32 %v1337, %v1303
      %v1339 = vmul.f32 %v1338, %v1337
      %v1340 = vmul.f32 0.5, %v1339
      %v1341 = vsub.f32 1.5, %v1340
      %v1342 = vmul.f32 %v1337, %v1341
      %vm1343 = vweird.f32 %v1303
      %vm1344 = vweird.f32 %v1337
      %vm1345 = vmor %vm1343, %vm1344
      %v1346 = vsel %vm1345, %v1337, %v1342
      %v1347 = vrsqrt.pop %v1304
      %v1348 = vmul.f32 %v1347, %v1304
      %v1349 = vmul.f32 %v1348, %v1347
      %v1350 = vmul.f32 0.5, %v1349
      %v1351 = vsub.f32 1.5, %v1350
      %v1352 = vmul.f32 %v1347, %v1351
      %vm1353 = vweird.f32 %v1304
      %vm1354 = vweird.f32 %v1347
      %vm1355 = vmor %vm1353, %vm1354
      %v1356 = vsel %vm1355, %v1347, %v1352
      %v1357 = vrsqrt.pop %v1305
      %v1358 = vmul.f32 %v1357, %v1305
      %v1359 = vmul.f32 %v1358, %v1357
      %v1360 = vmul.f32 0.5, %v1359
      %v1361 = vsub.f32 1.5, %v1360
      %v1362 = vmul.f32 %v1357, %v1361
      %vm1363 = vweird.f32 %v1305
      %vm1364 = vweird.f32 %v1357
      %vm1365 = vmor %vm1363, %vm1364
      %v1366 = vsel %vm1365, %v1357, %v1362
      %v1367 = vrsqrt.pop %v1306
      %v1368 = vmul.f32 %v1367, %v1306
      %v1369 = vmul.f32 %v1368, %v1367
      %v1370 = vmul.f32 0.5, %v1369
      %v1371 = vsub.f32 1.5, %v1370
      %v1372 = vmul.f32 %v1367, %v1371
      %vm1373 = vweird.f32 %v1306
      %vm1374 = vweird.f32 %v1367
      %vm1375 = vmor %vm1373, %vm1374
      %v1376 = vsel %vm1375, %v1367, %v1372
      %v1377 = vrsqrt.pop %v1307
      %v1378 = vmul.f32 %v1377, %v1307
      %v1379 = vmul.f32 %v1378, %v1377
      %v1380 = vmul.f32 0.5, %v1379
      %v1381 = vsub.f32 1.5, %v1380
      %v1382 = vmul.f32 %v1377, %v1381
      %vm1383 = vweird.f32 %v1307
      %vm1384 = vweird.f32 %v1377
      %vm1385 = vmor %vm1383, %vm1384
      %v1386 = vsel %vm1385, %v1377, %v1382
      %v1387 = vrsqrt.pop %v1308
      %v1388 = vmul.f32 %v1387, %v1308
      %v1389 = vmul.f32 %v1388, %v1387
      %v1390 = vmul.f32 0.5, %v1389
      %v1391 = vsub.f32 1.5, %v1390
      %v1392 = vmul.f32 %v1387, %v1391
      %vm1393 = vweird.f32 %v1308
      %vm1394 = vweird.f32 %v1387
      %vm1395 = vmor %vm1393, %vm1394
      %v1396 = vsel %vm1395, %v1387, %v1392
      %v1397 = vrsqrt.pop %v1309
      %v1398 = vmul.f32 %v1397, %v1309
      %v1399 = vmul.f32 %v1398, %v1397
      %v1400 = vmul.f32 0.5, %v1399
      %v1401 = vsub.f32 1.5, %v1400
      %v1402 = vmul.f32 %v1397, %v1401
      %vm1403 = vweird.f32 %v1309
      %vm1404 = vweird.f32 %v1397
      %vm1405 = vmor %vm1403, %vm1404
      %v1406 = vsel %vm1405, %v1397, %v1402
      %v1407 = vrsqrt.pop %v1310
      %v1408 = vmul.f32 %v1407, %v1310
      %v1409 = vmul.f32 %v1408, %v1407
      %v1410 = vmul.f32 0.5, %v1409
      %v1411 = vsub.f32 1.5, %v1410
      %v1412 = vmul.f32 %v1407, %v1411
      %vm1413 = vweird.f32 %v1310
      %vm1414 = vweird.f32 %v1407
      %vm1415 = vmor %vm1413, %vm1414
      %v1416 = vsel %vm1415, %v1407, %v1412
      %v1417 = vrsqrt.pop %v1311
      %v1418 = vmul.f32 %v1417, %v1311
      %v1419 = vmul.f32 %v1418, %v1417
      %v1420 = vmul.f32 0.5, %v1419
      %v1421 = vsub.f32 1.5, %v1420
      %v1422 = vmul.f32 %v1417, %v1421
      %vm1423 = vweird.f32 %v1311
      %vm1424 = vweird.f32 %v1417
      %vm1425 = vmor %vm1423, %vm1424
      %v1426 = vsel %vm1425, %v1417, %v1422
      %v1427 = vrsqrt.pop %v1312
      %v1428 = vmul.f32 %v1427, %v1312
      %v1429 = vmul.f32 %v1428, %v1427
      %v1430 = vmul.f32 0.5, %v1429
      %v1431 = vsub.f32 1.5, %v1430
      %v1432 = vmul.f32 %v1427, %v1431
      %vm1433 = vweird.f32 %v1312
      %vm1434 = vweird.f32 %v1427
      %vm1435 = vmor %vm1433, %vm1434
      %v1436 = vsel %vm1435, %v1427, %v1432
      %v1437 = vrsqrt.pop %v1313
      %v1438 = vmul.f32 %v1437, %v1313
      %v1439 = vmul.f32 %v1438, %v1437
      %v1440 = vmul.f32 0.5, %v1439
      %v1441 = vsub.f32 1.5, %v1440
      %v1442 = vmul.f32 %v1437, %v1441
      %vm1443 = vweird.f32 %v1313
      %vm1444 = vweird.f32 %v1437
      %vm1445 = vmor %vm1443, %vm1444
      %v1446 = vsel %vm1445, %v1437, %v1442
      %v1447 = vrsqrt.pop %v1314
      %v1448 = vmul.f32 %v1447, %v1314
      %v1449 = vmul.f32 %v1448, %v1447
      %v1450 = vmul.f32 0.5, %v1449
      %v1451 = vsub.f32 1.5, %v1450
      %v1452 = vmul.f32 %v1447, %v1451
      %vm1453 = vweird.f32 %v1314
      %vm1454 = vweird.f32 %v1447
      %vm1455 = vmor %vm1453, %vm1454
      %v1456 = vsel %vm1455, %v1447, %v1452
      %v1457 = vrsqrt.pop %v1315
      %v1458 = vmul.f32 %v1457, %v1315
      %v1459 = vmul.f32 %v1458, %v1457
      %v1460 = vmul.f32 0.5, %v1459
      %v1461 = vsub.f32 1.5, %v1460
      %v1462 = vmul.f32 %v1457, %v1461
      %vm1463 = vweird.f32 %v1315
      %vm1464 = vweird.f32 %v1457
      %vm1465 = vmor %vm1463, %vm1464
      %v1466 = vsel %vm1465, %v1457, %v1462
      %v1467 = vrsqrt.pop %v1316
      %v1468 = vmul.f32 %v1467, %v1316
      %v1469 = vmul.f32 %v1468, %v1467
      %v1470 = vmul.f32 0.5, %v1469
      %v1471 = vsub.f32 1.5, %v1470
      %v1472 = vmul.f32 %v1467, %v1471
      %vm1473 = vweird.f32 %v1316
      %vm1474 = vweird.f32 %v1467
      %vm1475 = vmor %vm1473, %vm1474
      %v1476 = vsel %vm1475, %v1467, %v1472
      %v1477 = vmul.f32 %v1285, %v1326
      %v1478 = vmul.f32 %v1286, %v1336
      %v1479 = vmul.f32 %v1287, %v1346
      %v1480 = vmul.f32 %v1288, %v1356
      %v1481 = vmul.f32 %v1289, %v1366
      %v1482 = vmul.f32 %v1290, %v1376
      %v1483 = vmul.f32 %v1291, %v1386
      %v1484 = vmul.f32 %v1292, %v1396
      %v1485 = vmul.f32 %v1293, %v1406
      %v1486 = vmul.f32 %v1294, %v1416
      %v1487 = vmul.f32 %v1295, %v1426
      %v1488 = vmul.f32 %v1296, %v1436
      %v1489 = vmul.f32 %v1297, %v1446
      %v1490 = vmul.f32 %v1298, %v1456
      %v1491 = vmul.f32 %v1299, %v1466
      %v1492 = vmul.f32 %v1300, %v1476
      %v1493 = vperm.slane %v283, 5
      %v1494 = vmul.f32 %v1477, %v1493
      %v1495 = vmul.f32 %v1478, %v1493
      %v1496 = vmul.f32 %v1479, %v1493
      %v1497 = vmul.f32 %v1480, %v1493
      %v1498 = vmul.f32 %v1481, %v1493
      %v1499 = vmul.f32 %v1482, %v1493
      %v1500 = vmul.f32 %v1483, %v1493
      %v1501 = vmul.f32 %v1484, %v1493
      %v1502 = vmul.f32 %v1485, %v1493
      %v1503 = vmul.f32 %v1486, %v1493
      %v1504 = vmul.f32 %v1487, %v1493
      %v1505 = vmul.f32 %v1488, %v1493
      %v1506 = vmul.f32 %v1489, %v1493
      %v1507 = vmul.f32 %v1490, %v1493
      %v1508 = vmul.f32 %v1491, %v1493
      %v1509 = vmul.f32 %v1492, %v1493
      %v1510 = vperm.slane %v283, 6
      %v1511 = vadd.f32 %v1494, %v1510
      %v1512 = vadd.f32 %v1495, %v1510
      %v1513 = vadd.f32 %v1496, %v1510
      %v1514 = vadd.f32 %v1497, %v1510
      %v1515 = vadd.f32 %v1498, %v1510
      %v1516 = vadd.f32 %v1499, %v1510
      %v1517 = vadd.f32 %v1500, %v1510
      %v1518 = vadd.f32 %v1501, %v1510
      %v1519 = vadd.f32 %v1502, %v1510
      %v1520 = vadd.f32 %v1503, %v1510
      %v1521 = vadd.f32 %v1504, %v1510
      %v1522 = vadd.f32 %v1505, %v1510
      %v1523 = vadd.f32 %v1506, %v1510
      %v1524 = vadd.f32 %v1507, %v1510
      %v1525 = vadd.f32 %v1508, %v1510
      %v1526 = vadd.f32 %v1509, %v1510
      %v1527 = vpack.c.bf16 %v1512, %v1511
      %v1528 = vpack.c.bf16 %v1514, %v1513
      %v1529 = vpack.c.bf16 %v1516, %v1515
      %v1530 = vpack.c.bf16 %v1518, %v1517
      %v1531 = vpack.c.bf16 %v1520, %v1519
      %v1532 = vpack.c.bf16 %v1522, %v1521
      %v1533 = vpack.c.bf16 %v1524, %v1523
      %v1534 = vpack.c.bf16 %v1526, %v1525
      %v1535 = vld [vmem:[%s4] sm:$0xf]
      %v1536 = vld [vmem:[%s4 + $0x4] sm:$0xf]
      %v1537 = vld [vmem:[%s4 + $0x8] sm:$0xf]
      %v1538 = vld [vmem:[%s4 + $0xc] sm:$0xf]
      %v1539 = vld [vmem:[%s6] sm:$0x1]
      %v1541 = vperm.slane %v1539, 0
      %v1547 = vunpack.c.l.b16 %v1535
      %v1548 = vunpack.c.l.b16 %v1536
      %v1549 = vunpack.c.l.b16 %v1537
      %v1550 = vunpack.c.l.b16 %v1538
      %v1551 = vpack.c.b16 %v1548, %v1547
      %v1552 = vpack.c.b16 %v1550, %v1549
      %v1556 = vsel %vm416, %v1527, 0
      %v1559 = vsel %vm416, %v1528, 0
      %v1562 = vsel %vm416, %v1529, 0
      %v1565 = vsel %vm416, %v1530, 0
      %v1568 = vsel %vm416, %v1531, 0
      %v1571 = vsel %vm416, %v1532, 0
      %v1574 = vsel %vm416, %v1533, 0
      %v1577 = vsel %vm416, %v1534, 0
      %1579 = vmatpush.bf16.msra.mxu0 0
      %1580 = vmatpush.bf16.msra.mxu0 0
      %1581 = vmatpush.bf16.msra.mxu0 0
      %1582 = vmatpush.bf16.msra.mxu0 0
      %1583 = vmatpush.bf16.msra.mxu0 0
      %1584 = vmatpush.bf16.msra.mxu0 0
      %1585 = vmatpush.bf16.msra.mxu0 %v1552
      %1586 = vmatpush.bf16.msra.mxu0 %v1551
      %1587 = vmatmul.bf16.gmra.mxu0 %v1556
      %v1588 = vpop.f32.mrf.mxu0
      %v1589 = vadd.f32 %v1541, %v1588
      %v1590 = vpop.f32.mrf.mxu0
      %v1591 = vadd.f32 %v1541, %v1590
      %1592 = vmatmul.bf16.gmra.mxu0 %v1559
      %v1593 = vpop.f32.mrf.mxu0
      %v1594 = vadd.f32 %v1541, %v1593
      %v1595 = vpop.f32.mrf.mxu0
      %v1596 = vadd.f32 %v1541, %v1595
      %1597 = vmatmul.bf16.gmra.mxu0 %v1562
      %v1598 = vpop.f32.mrf.mxu0
      %v1599 = vadd.f32 %v1541, %v1598
      %v1600 = vpop.f32.mrf.mxu0
      %v1601 = vadd.f32 %v1541, %v1600
      %1602 = vmatmul.bf16.gmra.mxu0 %v1565
      %v1603 = vpop.f32.mrf.mxu0
      %v1604 = vadd.f32 %v1541, %v1603
      %v1605 = vpop.f32.mrf.mxu0
      %v1606 = vadd.f32 %v1541, %v1605
      %1607 = vmatmul.bf16.gmra.mxu0 %v1568
      %v1608 = vpop.f32.mrf.mxu0
      %v1609 = vadd.f32 %v1541, %v1608
      %v1610 = vpop.f32.mrf.mxu0
      %v1611 = vadd.f32 %v1541, %v1610
      %1612 = vmatmul.bf16.gmra.mxu0 %v1571
      %v1613 = vpop.f32.mrf.mxu0
      %v1614 = vadd.f32 %v1541, %v1613
      %v1615 = vpop.f32.mrf.mxu0
      %v1616 = vadd.f32 %v1541, %v1615
      %1617 = vmatmul.bf16.gmra.mxu0 %v1574
      %v1618 = vpop.f32.mrf.mxu0
      %v1619 = vadd.f32 %v1541, %v1618
      %v1620 = vpop.f32.mrf.mxu0
      %v1621 = vadd.f32 %v1541, %v1620
      %1622 = vmatmul.bf16.gmra.mxu0 %v1577
      %v1623 = vpop.f32.mrf.mxu0
      %v1624 = vadd.f32 %v1541, %v1623
      %v1625 = vpop.f32.mrf.mxu0
      %v1626 = vadd.f32 %v1541, %v1625
      %1627 = vdwg.mxu0
      %1628 = vst.msk [vmem:[%s280] sm:$0xff] %vm317, %v1589
      %1629 = vst.msk [vmem:[%s280 + $0x8] sm:$0xff] %vm317, %v1591
      %1630 = vst.msk [vmem:[%s280 + $0x10] sm:$0xff] %vm317, %v1594
      %1631 = vst.msk [vmem:[%s280 + $0x18] sm:$0xff] %vm317, %v1596
      %1632 = vst.msk [vmem:[%s280 + $0x20] sm:$0xff] %vm317, %v1599
      %1633 = vst.msk [vmem:[%s280 + $0x28] sm:$0xff] %vm317, %v1601
      %1634 = vst.msk [vmem:[%s280 + $0x30] sm:$0xff] %vm317, %v1604
      %1635 = vst.msk [vmem:[%s280 + $0x38] sm:$0xff] %vm317, %v1606
      %1636 = vst.msk [vmem:[%s280 + $0x40] sm:$0xff] %vm317, %v1609
      %1637 = vst.msk [vmem:[%s280 + $0x48] sm:$0xff] %vm317, %v1611
      %1638 = vst.msk [vmem:[%s280 + $0x50] sm:$0xff] %vm317, %v1614
      %1639 = vst.msk [vmem:[%s280 + $0x58] sm:$0xff] %vm317, %v1616
      %1640 = vst.msk [vmem:[%s280 + $0x60] sm:$0xff] %vm317, %v1619
      %1641 = vst.msk [vmem:[%s280 + $0x68] sm:$0xff] %vm317, %v1621
      %1642 = vst.msk [vmem:[%s280 + $0x70] sm:$0xff] %vm317, %v1624
      %1643 = vst.msk [vmem:[%s280 + $0x78] sm:$0xff] %vm317, %v1626
      %s1644 = smul.u32 16, %s18
      %p1645 = scmp.lt.s32.totalorder %s1644, 31
      %s1646 = scalar_select %p1645, %s1644, 31
      %s1647 = smul.addr %s1646, 8
      %s1648 = scalar_lea.vmem %s7, %s1647
      // Predicated region
      $region49: #{tpu_custom_call.1} parent=47 // pred_check
        %p1649 = pneg %p188
      $region50: #{tpu_custom_call.1} parent=47 // pred_check_branch
        %1651 = sbr.rel (%p1649) target = $region52
      $region51: #{tpu_custom_call.1} parent=47 // pred_region
        %s1652 = smul.u32 16, %s18
      $region52: #{tpu_custom_call.1} parent=47 // pred_fallthru
        _
    $region48: #{tpu_custom_call.1} parent=5 // pred_fallthru
      _
    %p1653 = scmp.le.s32.totalorder 2, %s13
    // Predicated region
    $region53: #{tpu_custom_call.1} parent=5 // pred_check
      %p1654 = pneg %p1653
    $region54: #{tpu_custom_call.1} parent=5 // pred_check_branch
      %1656 = sbr.rel (%p1654) target = $region56
    $region55: #{tpu_custom_call.1} parent=5 // pred_region
      %s1657 = ssub.s32 %s13, 2
      // Predicated region
      $region57: #{tpu_custom_call.1} parent=55 // pred_check
        %p1658 = pneg %p194
      $region58: #{tpu_custom_call.1} parent=55 // pred_check_branch
        %1660 = sbr.rel (%p1658) target = $region60
      $region59: #{tpu_custom_call.1} parent=55 // pred_region
        %s1661 = smul.u32 16, %s19
        %p1662 = scmp.lt.s32.totalorder %s1661, 31
        %s1663 = scalar_select %p1662, %s1661, 31
        %s1664 = smul.addr %s1663, 8
        %s1665 = scalar_lea.vmem %s7, %s1664
      $region60: #{tpu_custom_call.1} parent=55 // pred_fallthru
        _
    $region56: #{tpu_custom_call.1} parent=5 // pred_fallthru
      _
  $region6: #{tpu_custom_call.1} parent=0 // loop_footer
    %s17 = sadd.s32 1, %s13
  $region7: #{tpu_custom_call.1} parent=0 // loop_footer_branch
    %12 = sbr.rel target = $region3
  $region8: #{tpu_custom_call.1} parent=0 // loop_exit
    _

</llo_original>
